<compile_context>
chip_gen: v5e
topology: v5e:2x2
jax: 0.10.0
libtpu: 0.0.40
codegen_flags: <defaults>
</compile_context>

<pallas_src>
import jax
import jax.numpy as jnp
from jax.experimental import pallas as pl
from jax.experimental.pallas import tpu as pltpu


def _leaky(x):
    # F.leaky_relu(x, 0.2)
    return jnp.where(x >= 0, x, 0.2 * x)


def _round_up(n, m):
    return -(-n // m) * m


def _is_v7x():
    try:
        return "v7" in jax.devices()[0].device_kind.lower()
    except Exception:
        return False


def _tpu_vmem_bytes():
    """Per-core VMEM capacity (best effort, with safe fallbacks)."""
    cap = None
    try:
        cap = int(pltpu.get_tpu_info().vmem_capacity_bytes)
    except Exception:
        cap = None
    if cap is None:
        cap = (64 << 20) if _is_v7x() else (128 << 20)
    if _is_v7x():
        cap = min(cap, 64 << 20)          # v7x VMEM is per-TensorCore
    return cap


def _tap_masks(H, W, HWp):
    """(9, 1, HWp) f32 validity masks (conv zero padding + lane padding)."""
    hh = jnp.arange(H)
    ww = jnp.arange(W)
    rows = []
    for dy in range(3):
        for dx in range(3):
            vh = (hh + dy - 1 >= 0) & (hh + dy - 1 < H)
            vw = (ww + dx - 1 >= 0) & (ww + dx - 1 < W)
            rows.append((vh[:, None] & vw[None, :]).reshape(H * W))
    m = jnp.stack(rows, axis=0).astype(jnp.float32)      # (9, H*W)
    m = jnp.pad(m, ((0, 0), (0, HWp - H * W)))           # zero the lane pad
    return m[:, None, :]                                  # (9, 1, HWp)


def _pick_batch_tile(B, Cp, Fp, fout, HWp, vmem_bytes, two_tc):
    """Largest divisor of B whose working set fits the VMEM budget."""
    K0, K1 = 9 * Cp, 9 * Fp + Cp
    # Grid-constant operands (weights bf16, masks f32), double-buffered.
    fixed = 2 * (Fp * K0 * 2 + fout * K1 * 2 + 9 * HWp * 4)
    # Per-image: double-buffered x(bf16)/out(f32) blocks, two bf16 patch
    # slabs, plus f32 temporaries (leaky, rolls, h, out) with headroom.
    per_img = HWp * (2 * 2 * Cp + 2 * 4 * fout + 2 * K0 + 2 * K1
                     + 4 * (3 * Cp + 6 * Fp + 2 * fout))
    budget = vmem_bytes // 4          # ~32 MiB on v5e/v6e, ~16 MiB on v7x
    target = max(1, (budget - fixed) // max(per_img, 1))
    if two_tc and B >= 2:
        target = min(target, max(1, B // 2))   # keep grid >= 2 for the 2 TCs
    target = min(target, B)
    bt = 1
    for d in range(1, int(target) + 1):
        if B % d == 0:
            bt = d
    return bt


def _make_kernel(W, HWp, Bt, Cp, Fp):
    offsets = [(dy - 1) * W + (dx - 1) for dy in range(3) for dx in range(3)]

    def kernel(x_ref, m_ref, w0_ref, w1_ref, o_ref, p0_s, p1_s):
        w0 = w0_ref[...]                        # (Fp, 9*Cp)       bf16
        w1 = w1_ref[...]                        # (fout, 9*Fp+Cp)  bf16
        masks = [m_ref[t] for t in range(9)]    # each (1, HWp)    f32

        def write_taps(act, scratch, rows, col):
            # act: (rows, HWp) f32 activated input; write the 9 rolled+masked
            # taps straight into the bf16 patch scratch (no concatenate).
            for t, off in enumerate(offsets):
                if off == 0:                    # centre tap: always in-bounds
                    tap = act
                else:
                    tap = pltpu.roll(act, shift=(-off) % HWp, axis=1) * masks[t]
                scratch[t * rows:(t + 1) * rows, col:col + HWp] = (
                    tap.astype(jnp.bfloat16))

        for b in range(Bt):                     # per-image chunks -> the patch
            col = b * HWp                       # build of image b+1 can overlap
            xb = x_ref[b]                       # the matmuls of image b
            write_taps(_leaky(xb.astype(jnp.float32)), p0_s, Cp, col)
            # raw-x shortcut rows of conv_1's fused K (includes ones channel).
            p1_s[9 * Fp:9 * Fp + Cp, col:col + HWp] = xb
            # h = conv_0(actvn(x)) + b0   (bias folded via the ones channel)
            h = jnp.dot(w0, p0_s[:, col:col + HWp],
                        preferred_element_type=jnp.float32)       # (Fp, HWp)
            write_taps(_leaky(h), p1_s, Fp, col)
            # out = shortcut(x) + 0.1*(conv_1(actvn(h)) + b1)  -- one matmul
            out = jnp.dot(w1, p1_s[:, col:col + HWp],
                          preferred_element_type=jnp.float32)     # (fout, HWp)
            o_ref[b] = out.astype(o_ref.dtype)                    # lane-dense

    return kernel


def resnet_block_pallas(x_nchw, w0_oihw, b0, w1_oihw, b1=None, ws_oihw=None, *,
                        is_bias=True, batch_tile=None):
    """ResnetBlock forward.  x_nchw: (B, fin, H, W); weights in PyTorch OIHW."""
    B, fin, H, W = x_nchw.shape
    fh = w0_oihw.shape[0]
    fout = w1_oihw.shape[0]
    HW = H * W
    learned_shortcut = fin != fout
    if learned_shortcut and ws_oihw is None:
        raise ValueError("fin != fout requires the 1x1 shortcut weight ws_oihw")

    # ---- trace-time preprocessing (free at runtime) -------------------------
    Cp = _round_up(fin + 1, 16)     # +1: ones channel used to fold biases
    Fp = _round_up(fh, 16)
    HWp = _round_up(HW, 128)        # 128-lane-aligned per-image boundaries
    K0 = 9 * Cp
    K1 = 9 * Fp + Cp

    # conv_0: (fh,fin,3,3) -> (Fp, 9*Cp); column t*Cp + c == tap t, channel c.
    w0t = jnp.transpose(w0_oihw, (0, 2, 3, 1)).astype(jnp.float32)   # (fh,3,3,fin)
    w0t = jnp.pad(w0t, ((0, Fp - fh), (0, 0), (0, 0), (0, Cp - fin)))
    w0t = w0t.at[:fh, 1, 1, fin].set(b0.astype(jnp.float32))         # b0 -> ones ch.
    w0f = w0t.reshape(Fp, K0).astype(jnp.bfloat16)

    # conv_1 with the 0.1 residual scale folded in, plus the fused shortcut.
    w1t = jnp.transpose(w1_oihw, (0, 2, 3, 1)).astype(jnp.float32) * 0.1
    w1t = jnp.pad(w1t, ((0, 0), (0, 0), (0, 0), (0, Fp - fh)))
    w1c = w1t.reshape(fout, 9 * Fp)
    if learned_shortcut:
        s = ws_oihw.reshape(fout, fin).astype(jnp.float32)
    else:
        s = jnp.eye(fout, fin, dtype=jnp.float32)
    s = jnp.pad(s, ((0, 0), (0, Cp - fin)))
    if is_bias:
        s = s.at[:, fin].set(0.1 * b1.astype(jnp.float32))           # 0.1*b1 -> ones ch.
    w1f = jnp.concatenate([w1c, s], axis=1).astype(jnp.bfloat16)     # (fout, K1)

    # ---- input: (B, Cp, HWp) bf16, ones channel at index fin ----------------
    x_flat = x_nchw.reshape(B, fin, HW).astype(jnp.float32)
    ones = jnp.ones((B, 1, HW), jnp.float32)
    x_aug = jnp.concatenate([x_flat, ones], axis=1)
    x_aug = jnp.pad(x_aug, ((0, 0), (0, Cp - fin - 1), (0, 0)))
    x_aug = jnp.pad(x_aug, ((0, 0), (0, 0), (0, HWp - HW)))
    x_aug = x_aug.astype(jnp.bfloat16)                               # half the DMA

    # ---- batch tiling (generation-aware VMEM budget) -------------------------
    vmem = _tpu_vmem_bytes()
    if batch_tile is None:
        Bt = _pick_batch_tile(B, Cp, Fp, fout, HWp, vmem, _is_v7x())
    else:
        Bt = batch_tile
        if B % Bt:
            raise ValueError("batch_tile must divide B")
    N = Bt * HWp

    masks = _tap_masks(H, W, HWp)
    kernel = _make_kernel(W, HWp, Bt, Cp, Fp)

    in_specs = [
        pl.BlockSpec((Bt, Cp, HWp), lambda g: (g, 0, 0)),
        pl.BlockSpec((9, 1, HWp), lambda g: (0, 0, 0)),
        pl.BlockSpec((Fp, K0), lambda g: (0, 0)),
        pl.BlockSpec((fout, K1), lambda g: (0, 0)),
    ]

    out_flat = pl.pallas_call(
        kernel,
        out_shape=jax.ShapeDtypeStruct((B, fout, HWp), x_nchw.dtype),
        grid=(B // Bt,),
        in_specs=in_specs,
        out_specs=pl.BlockSpec((Bt, fout, HWp), lambda g: (g, 0, 0)),
        scratch_shapes=[pltpu.VMEM((K0, N), jnp.bfloat16),   # conv_0 patches
                        pltpu.VMEM((K1, N), jnp.bfloat16)],  # conv_1 patches + x
        compiler_params=pltpu.CompilerParams(
            dimension_semantics=("parallel",),
            vmem_limit_bytes=int(vmem * 0.85)),
    )(x_aug, masks, w0f, w1f)

    return out_flat[:, :, :HW].reshape(B, fout, H, W)        # NCHW out


def _reference(x, w0, b0, w1, b1, ws, is_bias=True):
    def conv(inp, w, b, pad):
        y = jax.lax.conv_general_dilated(
            inp, w, window_strides=(1, 1), padding=[(pad, pad), (pad, pad)],
            dimension_numbers=('NCHW', 'OIHW', 'NCHW'))
        if b is not None:
            y = y + b[None, :, None, None]
        return y

    dx = conv(_leaky(x), w0, b0, 1)
    dx = conv(_leaky(dx), w1, b1 if is_bias else None, 1)
    xs = conv(x, ws, None, 0) if ws is not None else x       # identity if fin==fout
    return xs + 0.1 * dx


if __name__ == "__main__":
    def run_case(key, B, fin, fout, H, W, is_bias):
        fh = min(fin, fout)
        learned = fin != fout
        ks = jax.random.split(key, 6)
        x = jax.random.normal(ks[0], (B, fin, H, W), jnp.float32)
        w0 = 0.1 * jax.random.normal(ks[1], (fh, fin, 3, 3), jnp.float32)
        b0 = jax.random.normal(ks[2], (fh,), jnp.float32)
        w1 = 0.1 * jax.random.normal(ks[3], (fout, fh, 3, 3), jnp.float32)
        b1 = jax.random.normal(ks[4], (fout,), jnp.float32) if is_bias else None
        ws = (0.1 * jax.random.normal(ks[5], (fout, fin, 1, 1), jnp.float32)
              if learned else None)

        out = resnet_block_pallas(x, w0, b0, w1, b1, ws, is_bias=is_bias)
        out = jax.block_until_ready(out)
        ref = _reference(x, w0, b0, w1, b1, ws, is_bias=is_bias)
        assert out.shape == (B, fout, H, W)
        err = float(jnp.max(jnp.abs(out - ref)))
        # bf16 MXU inputs with f32 accumulation -> loosened tolerance.
        assert jnp.allclose(out, ref, atol=5e-2, rtol=1e-2), err

    key = jax.random.PRNGKey(0)
    k1, k2, k3 = jax.random.split(key, 3)
    # learned 1x1 shortcut (fin != fout), conv_1 with bias, aligned HW
    run_case(k1, B=2, fin=4, fout=8, H=16, W=16, is_bias=True)
    # identity shortcut (fin == fout), conv_1 without bias
    run_case(k2, B=2, fin=8, fout=8, H=16, W=16, is_bias=False)
    # odd batch, unaligned H*W (144 -> 128-lane padded), fout < fin
    run_case(k3, B=3, fin=8, fout=4, H=12, W=12, is_bias=True)
    print("KERNEL_OK")
</pallas_src>

<mosaic_0001>
module attributes {stable_mosaic.version = 11 : i64} {
  func.func @kernel(%arg0: i32, %arg1: memref<2x16x256xbf16, #tpu.memory_space<vmem>>, %arg2: memref<9x1x256xf32, #tpu.memory_space<vmem>>, %arg3: memref<16x144xbf16, #tpu.memory_space<vmem>>, %arg4: memref<8x160xbf16, #tpu.memory_space<vmem>>, %arg5: memref<2x8x256xf32, #tpu.memory_space<vmem>>, %arg6: memref<144x512xbf16, #tpu.memory_space<vmem>>, %arg7: memref<160x512xbf16, #tpu.memory_space<vmem>>) attributes {dimension_semantics = [#tpu.dimension_semantics<parallel>], iteration_bounds = array<i64: 1>, scalar_prefetch = 0 : i64, scratch_operands = 2 : i64, tpu.core_type = #tpu.core_type<tc>, window_params = [{transform_indices = @transform_0, window_bounds = array<i64: 2, 16, 256>}, {pipeline_mode = #tpu.pipeline_mode<synchronous>, transform_indices = @transform_1, window_bounds = array<i64: 9, 1, 256>}, {pipeline_mode = #tpu.pipeline_mode<synchronous>, transform_indices = @transform_2, window_bounds = array<i64: 16, 144>}, {pipeline_mode = #tpu.pipeline_mode<synchronous>, transform_indices = @transform_3, window_bounds = array<i64: 8, 160>}, {transform_indices = @transform_4, window_bounds = array<i64: 2, 8, 256>}]} {
    %c0 = arith.constant 0 : index
    %c0_0 = arith.constant 0 : index
    %0 = vector.load %arg3[%c0, %c0_0] : memref<16x144xbf16, #tpu.memory_space<vmem>>, vector<16x144xbf16>
    %c0_1 = arith.constant 0 : index
    %c0_2 = arith.constant 0 : index
    %1 = vector.load %arg4[%c0_1, %c0_2] : memref<8x160xbf16, #tpu.memory_space<vmem>>, vector<8x160xbf16>
    %c0_3 = arith.constant 0 : index
    %c0_4 = arith.constant 0 : index
    %c0_5 = arith.constant 0 : index
    %2 = vector.load %arg2[%c0_3, %c0_4, %c0_5] : memref<9x1x256xf32, #tpu.memory_space<vmem>>, vector<1x1x256xf32>
    %3 = vector.shape_cast %2 : vector<1x1x256xf32> to vector<1x256xf32>
    %c1 = arith.constant 1 : index
    %c0_6 = arith.constant 0 : index
    %c0_7 = arith.constant 0 : index
    %4 = vector.load %arg2[%c1, %c0_6, %c0_7] : memref<9x1x256xf32, #tpu.memory_space<vmem>>, vector<1x1x256xf32>
    %5 = vector.shape_cast %4 : vector<1x1x256xf32> to vector<1x256xf32>
    %c2 = arith.constant 2 : index
    %c0_8 = arith.constant 0 : index
    %c0_9 = arith.constant 0 : index
    %6 = vector.load %arg2[%c2, %c0_8, %c0_9] : memref<9x1x256xf32, #tpu.memory_space<vmem>>, vector<1x1x256xf32>
    %7 = vector.shape_cast %6 : vector<1x1x256xf32> to vector<1x256xf32>
    %c3 = arith.constant 3 : index
    %c0_10 = arith.constant 0 : index
    %c0_11 = arith.constant 0 : index
    %8 = vector.load %arg2[%c3, %c0_10, %c0_11] : memref<9x1x256xf32, #tpu.memory_space<vmem>>, vector<1x1x256xf32>
    %9 = vector.shape_cast %8 : vector<1x1x256xf32> to vector<1x256xf32>
    %c5 = arith.constant 5 : index
    %c0_12 = arith.constant 0 : index
    %c0_13 = arith.constant 0 : index
    %10 = vector.load %arg2[%c5, %c0_12, %c0_13] : memref<9x1x256xf32, #tpu.memory_space<vmem>>, vector<1x1x256xf32>
    %11 = vector.shape_cast %10 : vector<1x1x256xf32> to vector<1x256xf32>
    %c6 = arith.constant 6 : index
    %c0_14 = arith.constant 0 : index
    %c0_15 = arith.constant 0 : index
    %12 = vector.load %arg2[%c6, %c0_14, %c0_15] : memref<9x1x256xf32, #tpu.memory_space<vmem>>, vector<1x1x256xf32>
    %13 = vector.shape_cast %12 : vector<1x1x256xf32> to vector<1x256xf32>
    %c7 = arith.constant 7 : index
    %c0_16 = arith.constant 0 : index
    %c0_17 = arith.constant 0 : index
    %14 = vector.load %arg2[%c7, %c0_16, %c0_17] : memref<9x1x256xf32, #tpu.memory_space<vmem>>, vector<1x1x256xf32>
    %15 = vector.shape_cast %14 : vector<1x1x256xf32> to vector<1x256xf32>
    %c8 = arith.constant 8 : index
    %c0_18 = arith.constant 0 : index
    %c0_19 = arith.constant 0 : index
    %16 = vector.load %arg2[%c8, %c0_18, %c0_19] : memref<9x1x256xf32, #tpu.memory_space<vmem>>, vector<1x1x256xf32>
    %17 = vector.shape_cast %16 : vector<1x1x256xf32> to vector<1x256xf32>
    %c0_20 = arith.constant 0 : index
    %c0_21 = arith.constant 0 : index
    %c0_22 = arith.constant 0 : index
    %18 = vector.load %arg1[%c0_20, %c0_21, %c0_22] : memref<2x16x256xbf16, #tpu.memory_space<vmem>>, vector<1x16x256xbf16>
    %19 = vector.shape_cast %18 : vector<1x16x256xbf16> to vector<16x256xbf16>
    %20 = arith.extf %19 : vector<16x256xbf16> to vector<16x256xf32>
    %cst = arith.constant 0.000000e+00 : f32
    %21 = vector.broadcast %cst : f32 to vector<16x256xf32>
    %22 = arith.cmpf oge, %20, %21 : vector<16x256xf32>
    %cst_23 = arith.constant 2.000000e-01 : f32
    %23 = vector.broadcast %cst_23 : f32 to vector<16x256xf32>
    %24 = arith.mulf %23, %20 : vector<16x256xf32>
    %25 = arith.select %22, %20, %24 : vector<16x256xi1>, vector<16x256xf32>
    %c17_i32 = arith.constant 17 : i32
    %26 = tpu.dynamic_rotate %25 by %c17_i32 dim 1 : vector<16x256xf32>, i32 -> vector<16x256xf32>
    %27 = vector.broadcast %3 : vector<1x256xf32> to vector<16x256xf32>
    %28 = arith.mulf %26, %27 : vector<16x256xf32>
    %29 = arith.truncf %28 : vector<16x256xf32> to vector<16x256xbf16>
    %c0_24 = arith.constant 0 : index
    %c0_25 = arith.constant 0 : index
    %30 = vector.load %arg6[%c0_24, %c0_25] : memref<144x512xbf16, #tpu.memory_space<vmem>>, vector<16x256xbf16>
    tpu.vector_store %arg6[%c0_24, %c0_25], %29 {strides = array<i32>} : memref<144x512xbf16, #tpu.memory_space<vmem>>, vector<16x256xbf16>,
    %c16_i32 = arith.constant 16 : i32
    %31 = tpu.dynamic_rotate %25 by %c16_i32 dim 1 : vector<16x256xf32>, i32 -> vector<16x256xf32>
    %32 = vector.broadcast %5 : vector<1x256xf32> to vector<16x256xf32>
    %33 = arith.mulf %31, %32 : vector<16x256xf32>
    %34 = arith.truncf %33 : vector<16x256xf32> to vector<16x256xbf16>
    %c16 = arith.constant 16 : index
    %c0_26 = arith.constant 0 : index
    %35 = vector.load %arg6[%c16, %c0_26] : memref<144x512xbf16, #tpu.memory_space<vmem>>, vector<16x256xbf16>
    tpu.vector_store %arg6[%c16, %c0_26], %34 {strides = array<i32>} : memref<144x512xbf16, #tpu.memory_space<vmem>>, vector<16x256xbf16>,
    %c15_i32 = arith.constant 15 : i32
    %36 = tpu.dynamic_rotate %25 by %c15_i32 dim 1 : vector<16x256xf32>, i32 -> vector<16x256xf32>
    %37 = vector.broadcast %7 : vector<1x256xf32> to vector<16x256xf32>
    %38 = arith.mulf %36, %37 : vector<16x256xf32>
    %39 = arith.truncf %38 : vector<16x256xf32> to vector<16x256xbf16>
    %c32 = arith.constant 32 : index
    %c0_27 = arith.constant 0 : index
    %40 = vector.load %arg6[%c32, %c0_27] : memref<144x512xbf16, #tpu.memory_space<vmem>>, vector<16x256xbf16>
    tpu.vector_store %arg6[%c32, %c0_27], %39 {strides = array<i32>} : memref<144x512xbf16, #tpu.memory_space<vmem>>, vector<16x256xbf16>,
    %c1_i32 = arith.constant 1 : i32
    %41 = tpu.dynamic_rotate %25 by %c1_i32 dim 1 : vector<16x256xf32>, i32 -> vector<16x256xf32>
    %42 = vector.broadcast %9 : vector<1x256xf32> to vector<16x256xf32>
    %43 = arith.mulf %41, %42 : vector<16x256xf32>
    %44 = arith.truncf %43 : vector<16x256xf32> to vector<16x256xbf16>
    %c48 = arith.constant 48 : index
    %c0_28 = arith.constant 0 : index
    %45 = vector.load %arg6[%c48, %c0_28] : memref<144x512xbf16, #tpu.memory_space<vmem>>, vector<16x256xbf16>
    tpu.vector_store %arg6[%c48, %c0_28], %44 {strides = array<i32>} : memref<144x512xbf16, #tpu.memory_space<vmem>>, vector<16x256xbf16>,
    %46 = arith.truncf %25 : vector<16x256xf32> to vector<16x256xbf16>
    %c64 = arith.constant 64 : index
    %c0_29 = arith.constant 0 : index
    %47 = vector.load %arg6[%c64, %c0_29] : memref<144x512xbf16, #tpu.memory_space<vmem>>, vector<16x256xbf16>
    tpu.vector_store %arg6[%c64, %c0_29], %46 {strides = array<i32>} : memref<144x512xbf16, #tpu.memory_space<vmem>>, vector<16x256xbf16>,
    %c255_i32 = arith.constant 255 : i32
    %48 = tpu.dynamic_rotate %25 by %c255_i32 dim 1 : vector<16x256xf32>, i32 -> vector<16x256xf32>
    %49 = vector.broadcast %11 : vector<1x256xf32> to vector<16x256xf32>
    %50 = arith.mulf %48, %49 : vector<16x256xf32>
    %51 = arith.truncf %50 : vector<16x256xf32> to vector<16x256xbf16>
    %c80 = arith.constant 80 : index
    %c0_30 = arith.constant 0 : index
    %52 = vector.load %arg6[%c80, %c0_30] : memref<144x512xbf16, #tpu.memory_space<vmem>>, vector<16x256xbf16>
    tpu.vector_store %arg6[%c80, %c0_30], %51 {strides = array<i32>} : memref<144x512xbf16, #tpu.memory_space<vmem>>, vector<16x256xbf16>,
    %c241_i32 = arith.constant 241 : i32
    %53 = tpu.dynamic_rotate %25 by %c241_i32 dim 1 : vector<16x256xf32>, i32 -> vector<16x256xf32>
    %54 = vector.broadcast %13 : vector<1x256xf32> to vector<16x256xf32>
    %55 = arith.mulf %53, %54 : vector<16x256xf32>
    %56 = arith.truncf %55 : vector<16x256xf32> to vector<16x256xbf16>
    %c96 = arith.constant 96 : index
    %c0_31 = arith.constant 0 : index
    %57 = vector.load %arg6[%c96, %c0_31] : memref<144x512xbf16, #tpu.memory_space<vmem>>, vector<16x256xbf16>
    tpu.vector_store %arg6[%c96, %c0_31], %56 {strides = array<i32>} : memref<144x512xbf16, #tpu.memory_space<vmem>>, vector<16x256xbf16>,
    %c240_i32 = arith.constant 240 : i32
    %58 = tpu.dynamic_rotate %25 by %c240_i32 dim 1 : vector<16x256xf32>, i32 -> vector<16x256xf32>
    %59 = vector.broadcast %15 : vector<1x256xf32> to vector<16x256xf32>
    %60 = arith.mulf %58, %59 : vector<16x256xf32>
    %61 = arith.truncf %60 : vector<16x256xf32> to vector<16x256xbf16>
    %c112 = arith.constant 112 : index
    %c0_32 = arith.constant 0 : index
    %62 = vector.load %arg6[%c112, %c0_32] : memref<144x512xbf16, #tpu.memory_space<vmem>>, vector<16x256xbf16>
    tpu.vector_store %arg6[%c112, %c0_32], %61 {strides = array<i32>} : memref<144x512xbf16, #tpu.memory_space<vmem>>, vector<16x256xbf16>,
    %c239_i32 = arith.constant 239 : i32
    %63 = tpu.dynamic_rotate %25 by %c239_i32 dim 1 : vector<16x256xf32>, i32 -> vector<16x256xf32>
    %64 = vector.broadcast %17 : vector<1x256xf32> to vector<16x256xf32>
    %65 = arith.mulf %63, %64 : vector<16x256xf32>
    %66 = arith.truncf %65 : vector<16x256xf32> to vector<16x256xbf16>
    %c128 = arith.constant 128 : index
    %c0_33 = arith.constant 0 : index
    %67 = vector.load %arg6[%c128, %c0_33] : memref<144x512xbf16, #tpu.memory_space<vmem>>, vector<16x256xbf16>
    tpu.vector_store %arg6[%c128, %c0_33], %66 {strides = array<i32>} : memref<144x512xbf16, #tpu.memory_space<vmem>>, vector<16x256xbf16>,
    %c144 = arith.constant 144 : index
    %c0_34 = arith.constant 0 : index
    %68 = vector.load %arg7[%c144, %c0_34] : memref<160x512xbf16, #tpu.memory_space<vmem>>, vector<16x256xbf16>
    tpu.vector_store %arg7[%c144, %c0_34], %19 {strides = array<i32>} : memref<160x512xbf16, #tpu.memory_space<vmem>>, vector<16x256xbf16>,
    %c0_35 = arith.constant 0 : index
    %c0_36 = arith.constant 0 : index
    %69 = vector.load %arg6[%c0_35, %c0_36] : memref<144x512xbf16, #tpu.memory_space<vmem>>, vector<144x256xbf16>
    %cst_37 = arith.constant dense<0.000000e+00> : vector<16x256xf32>
    %70 = tpu.matmul %0, %69, %cst_37 {dimension_numbers = #tpu.dot_dimension_numbers<[1], [0], [0], [1], [0, 0, 1, 1], [], []>} : vector<16x144xbf16>, vector<144x256xbf16>, vector<16x256xf32> -> vector<16x256xf32>
    %cst_38 = arith.constant 0.000000e+00 : f32
    %71 = vector.broadcast %cst_38 : f32 to vector<16x256xf32>
    %72 = arith.cmpf oge, %70, %71 : vector<16x256xf32>
    %cst_39 = arith.constant 2.000000e-01 : f32
    %73 = vector.broadcast %cst_39 : f32 to vector<16x256xf32>
    %74 = arith.mulf %73, %70 : vector<16x256xf32>
    %75 = arith.select %72, %70, %74 : vector<16x256xi1>, vector<16x256xf32>
    %c17_i32_40 = arith.constant 17 : i32
    %76 = tpu.dynamic_rotate %75 by %c17_i32_40 dim 1 : vector<16x256xf32>, i32 -> vector<16x256xf32>
    %77 = vector.broadcast %3 : vector<1x256xf32> to vector<16x256xf32>
    %78 = arith.mulf %76, %77 : vector<16x256xf32>
    %79 = arith.truncf %78 : vector<16x256xf32> to vector<16x256xbf16>
    %c0_41 = arith.constant 0 : index
    %c0_42 = arith.constant 0 : index
    %80 = vector.load %arg7[%c0_41, %c0_42] : memref<160x512xbf16, #tpu.memory_space<vmem>>, vector<16x256xbf16>
    tpu.vector_store %arg7[%c0_41, %c0_42], %79 {strides = array<i32>} : memref<160x512xbf16, #tpu.memory_space<vmem>>, vector<16x256xbf16>,
    %c16_i32_43 = arith.constant 16 : i32
    %81 = tpu.dynamic_rotate %75 by %c16_i32_43 dim 1 : vector<16x256xf32>, i32 -> vector<16x256xf32>
    %82 = vector.broadcast %5 : vector<1x256xf32> to vector<16x256xf32>
    %83 = arith.mulf %81, %82 : vector<16x256xf32>
    %84 = arith.truncf %83 : vector<16x256xf32> to vector<16x256xbf16>
    %c16_44 = arith.constant 16 : index
    %c0_45 = arith.constant 0 : index
    %85 = vector.load %arg7[%c16_44, %c0_45] : memref<160x512xbf16, #tpu.memory_space<vmem>>, vector<16x256xbf16>
    tpu.vector_store %arg7[%c16_44, %c0_45], %84 {strides = array<i32>} : memref<160x512xbf16, #tpu.memory_space<vmem>>, vector<16x256xbf16>,
    %c15_i32_46 = arith.constant 15 : i32
    %86 = tpu.dynamic_rotate %75 by %c15_i32_46 dim 1 : vector<16x256xf32>, i32 -> vector<16x256xf32>
    %87 = vector.broadcast %7 : vector<1x256xf32> to vector<16x256xf32>
    %88 = arith.mulf %86, %87 : vector<16x256xf32>
    %89 = arith.truncf %88 : vector<16x256xf32> to vector<16x256xbf16>
    %c32_47 = arith.constant 32 : index
    %c0_48 = arith.constant 0 : index
    %90 = vector.load %arg7[%c32_47, %c0_48] : memref<160x512xbf16, #tpu.memory_space<vmem>>, vector<16x256xbf16>
    tpu.vector_store %arg7[%c32_47, %c0_48], %89 {strides = array<i32>} : memref<160x512xbf16, #tpu.memory_space<vmem>>, vector<16x256xbf16>,
    %c1_i32_49 = arith.constant 1 : i32
    %91 = tpu.dynamic_rotate %75 by %c1_i32_49 dim 1 : vector<16x256xf32>, i32 -> vector<16x256xf32>
    %92 = vector.broadcast %9 : vector<1x256xf32> to vector<16x256xf32>
    %93 = arith.mulf %91, %92 : vector<16x256xf32>
    %94 = arith.truncf %93 : vector<16x256xf32> to vector<16x256xbf16>
    %c48_50 = arith.constant 48 : index
    %c0_51 = arith.constant 0 : index
    %95 = vector.load %arg7[%c48_50, %c0_51] : memref<160x512xbf16, #tpu.memory_space<vmem>>, vector<16x256xbf16>
    tpu.vector_store %arg7[%c48_50, %c0_51], %94 {strides = array<i32>} : memref<160x512xbf16, #tpu.memory_space<vmem>>, vector<16x256xbf16>,
    %96 = arith.truncf %75 : vector<16x256xf32> to vector<16x256xbf16>
    %c64_52 = arith.constant 64 : index
    %c0_53 = arith.constant 0 : index
    %97 = vector.load %arg7[%c64_52, %c0_53] : memref<160x512xbf16, #tpu.memory_space<vmem>>, vector<16x256xbf16>
    tpu.vector_store %arg7[%c64_52, %c0_53], %96 {strides = array<i32>} : memref<160x512xbf16, #tpu.memory_space<vmem>>, vector<16x256xbf16>,
    %c255_i32_54 = arith.constant 255 : i32
    %98 = tpu.dynamic_rotate %75 by %c255_i32_54 dim 1 : vector<16x256xf32>, i32 -> vector<16x256xf32>
    %99 = vector.broadcast %11 : vector<1x256xf32> to vector<16x256xf32>
    %100 = arith.mulf %98, %99 : vector<16x256xf32>
    %101 = arith.truncf %100 : vector<16x256xf32> to vector<16x256xbf16>
    %c80_55 = arith.constant 80 : index
    %c0_56 = arith.constant 0 : index
    %102 = vector.load %arg7[%c80_55, %c0_56] : memref<160x512xbf16, #tpu.memory_space<vmem>>, vector<16x256xbf16>
    tpu.vector_store %arg7[%c80_55, %c0_56], %101 {strides = array<i32>} : memref<160x512xbf16, #tpu.memory_space<vmem>>, vector<16x256xbf16>,
    %c241_i32_57 = arith.constant 241 : i32
    %103 = tpu.dynamic_rotate %75 by %c241_i32_57 dim 1 : vector<16x256xf32>, i32 -> vector<16x256xf32>
    %104 = vector.broadcast %13 : vector<1x256xf32> to vector<16x256xf32>
    %105 = arith.mulf %103, %104 : vector<16x256xf32>
    %106 = arith.truncf %105 : vector<16x256xf32> to vector<16x256xbf16>
    %c96_58 = arith.constant 96 : index
    %c0_59 = arith.constant 0 : index
    %107 = vector.load %arg7[%c96_58, %c0_59] : memref<160x512xbf16, #tpu.memory_space<vmem>>, vector<16x256xbf16>
    tpu.vector_store %arg7[%c96_58, %c0_59], %106 {strides = array<i32>} : memref<160x512xbf16, #tpu.memory_space<vmem>>, vector<16x256xbf16>,
    %c240_i32_60 = arith.constant 240 : i32
    %108 = tpu.dynamic_rotate %75 by %c240_i32_60 dim 1 : vector<16x256xf32>, i32 -> vector<16x256xf32>
    %109 = vector.broadcast %15 : vector<1x256xf32> to vector<16x256xf32>
    %110 = arith.mulf %108, %109 : vector<16x256xf32>
    %111 = arith.truncf %110 : vector<16x256xf32> to vector<16x256xbf16>
    %c112_61 = arith.constant 112 : index
    %c0_62 = arith.constant 0 : index
    %112 = vector.load %arg7[%c112_61, %c0_62] : memref<160x512xbf16, #tpu.memory_space<vmem>>, vector<16x256xbf16>
    tpu.vector_store %arg7[%c112_61, %c0_62], %111 {strides = array<i32>} : memref<160x512xbf16, #tpu.memory_space<vmem>>, vector<16x256xbf16>,
    %c239_i32_63 = arith.constant 239 : i32
    %113 = tpu.dynamic_rotate %75 by %c239_i32_63 dim 1 : vector<16x256xf32>, i32 -> vector<16x256xf32>
    %114 = vector.broadcast %17 : vector<1x256xf32> to vector<16x256xf32>
    %115 = arith.mulf %113, %114 : vector<16x256xf32>
    %116 = arith.truncf %115 : vector<16x256xf32> to vector<16x256xbf16>
    %c128_64 = arith.constant 128 : index
    %c0_65 = arith.constant 0 : index
    %117 = vector.load %arg7[%c128_64, %c0_65] : memref<160x512xbf16, #tpu.memory_space<vmem>>, vector<16x256xbf16>
    tpu.vector_store %arg7[%c128_64, %c0_65], %116 {strides = array<i32>} : memref<160x512xbf16, #tpu.memory_space<vmem>>, vector<16x256xbf16>,
    %c0_66 = arith.constant 0 : index
    %c0_67 = arith.constant 0 : index
    %118 = vector.load %arg7[%c0_66, %c0_67] : memref<160x512xbf16, #tpu.memory_space<vmem>>, vector<160x256xbf16>
    %cst_68 = arith.constant dense<0.000000e+00> : vector<8x256xf32>
    %119 = tpu.matmul %1, %118, %cst_68 {dimension_numbers = #tpu.dot_dimension_numbers<[1], [0], [0], [1], [0, 0, 1, 1], [], []>} : vector<8x160xbf16>, vector<160x256xbf16>, vector<8x256xf32> -> vector<8x256xf32>
    %c0_69 = arith.constant 0 : index
    %c0_70 = arith.constant 0 : index
    %c0_71 = arith.constant 0 : index
    %120 = vector.load %arg5[%c0_69, %c0_70, %c0_71] : memref<2x8x256xf32, #tpu.memory_space<vmem>>, vector<1x8x256xf32>
    %121 = vector.shape_cast %120 : vector<1x8x256xf32> to vector<8x256xf32>
    %122 = vector.shape_cast %119 : vector<8x256xf32> to vector<1x8x256xf32>
    tpu.vector_store %arg5[%c0_69, %c0_70, %c0_71], %122 {strides = array<i32>} : memref<2x8x256xf32, #tpu.memory_space<vmem>>, vector<1x8x256xf32>,
    %c1_72 = arith.constant 1 : index
    %c0_73 = arith.constant 0 : index
    %c0_74 = arith.constant 0 : index
    %123 = vector.load %arg1[%c1_72, %c0_73, %c0_74] : memref<2x16x256xbf16, #tpu.memory_space<vmem>>, vector<1x16x256xbf16>
    %124 = vector.shape_cast %123 : vector<1x16x256xbf16> to vector<16x256xbf16>
    %125 = arith.extf %124 : vector<16x256xbf16> to vector<16x256xf32>
    %cst_75 = arith.constant 0.000000e+00 : f32
    %126 = vector.broadcast %cst_75 : f32 to vector<16x256xf32>
    %127 = arith.cmpf oge, %125, %126 : vector<16x256xf32>
    %cst_76 = arith.constant 2.000000e-01 : f32
    %128 = vector.broadcast %cst_76 : f32 to vector<16x256xf32>
    %129 = arith.mulf %128, %125 : vector<16x256xf32>
    %130 = arith.select %127, %125, %129 : vector<16x256xi1>, vector<16x256xf32>
    %c17_i32_77 = arith.constant 17 : i32
    %131 = tpu.dynamic_rotate %130 by %c17_i32_77 dim 1 : vector<16x256xf32>, i32 -> vector<16x256xf32>
    %132 = vector.broadcast %3 : vector<1x256xf32> to vector<16x256xf32>
    %133 = arith.mulf %131, %132 : vector<16x256xf32>
    %134 = arith.truncf %133 : vector<16x256xf32> to vector<16x256xbf16>
    %c0_78 = arith.constant 0 : index
    %c256 = arith.constant 256 : index
    %135 = vector.load %arg6[%c0_78, %c256] : memref<144x512xbf16, #tpu.memory_space<vmem>>, vector<16x256xbf16>
    tpu.vector_store %arg6[%c0_78, %c256], %134 {strides = array<i32>} : memref<144x512xbf16, #tpu.memory_space<vmem>>, vector<16x256xbf16>,
    %c16_i32_79 = arith.constant 16 : i32
    %136 = tpu.dynamic_rotate %130 by %c16_i32_79 dim 1 : vector<16x256xf32>, i32 -> vector<16x256xf32>
    %137 = vector.broadcast %5 : vector<1x256xf32> to vector<16x256xf32>
    %138 = arith.mulf %136, %137 : vector<16x256xf32>
    %139 = arith.truncf %138 : vector<16x256xf32> to vector<16x256xbf16>
    %c16_80 = arith.constant 16 : index
    %c256_81 = arith.constant 256 : index
    %140 = vector.load %arg6[%c16_80, %c256_81] : memref<144x512xbf16, #tpu.memory_space<vmem>>, vector<16x256xbf16>
    tpu.vector_store %arg6[%c16_80, %c256_81], %139 {strides = array<i32>} : memref<144x512xbf16, #tpu.memory_space<vmem>>, vector<16x256xbf16>,
    %c15_i32_82 = arith.constant 15 : i32
    %141 = tpu.dynamic_rotate %130 by %c15_i32_82 dim 1 : vector<16x256xf32>, i32 -> vector<16x256xf32>
    %142 = vector.broadcast %7 : vector<1x256xf32> to vector<16x256xf32>
    %143 = arith.mulf %141, %142 : vector<16x256xf32>
    %144 = arith.truncf %143 : vector<16x256xf32> to vector<16x256xbf16>
    %c32_83 = arith.constant 32 : index
    %c256_84 = arith.constant 256 : index
    %145 = vector.load %arg6[%c32_83, %c256_84] : memref<144x512xbf16, #tpu.memory_space<vmem>>, vector<16x256xbf16>
    tpu.vector_store %arg6[%c32_83, %c256_84], %144 {strides = array<i32>} : memref<144x512xbf16, #tpu.memory_space<vmem>>, vector<16x256xbf16>,
    %c1_i32_85 = arith.constant 1 : i32
    %146 = tpu.dynamic_rotate %130 by %c1_i32_85 dim 1 : vector<16x256xf32>, i32 -> vector<16x256xf32>
    %147 = vector.broadcast %9 : vector<1x256xf32> to vector<16x256xf32>
    %148 = arith.mulf %146, %147 : vector<16x256xf32>
    %149 = arith.truncf %148 : vector<16x256xf32> to vector<16x256xbf16>
    %c48_86 = arith.constant 48 : index
    %c256_87 = arith.constant 256 : index
    %150 = vector.load %arg6[%c48_86, %c256_87] : memref<144x512xbf16, #tpu.memory_space<vmem>>, vector<16x256xbf16>
    tpu.vector_store %arg6[%c48_86, %c256_87], %149 {strides = array<i32>} : memref<144x512xbf16, #tpu.memory_space<vmem>>, vector<16x256xbf16>,
    %151 = arith.truncf %130 : vector<16x256xf32> to vector<16x256xbf16>
    %c64_88 = arith.constant 64 : index
    %c256_89 = arith.constant 256 : index
    %152 = vector.load %arg6[%c64_88, %c256_89] : memref<144x512xbf16, #tpu.memory_space<vmem>>, vector<16x256xbf16>
    tpu.vector_store %arg6[%c64_88, %c256_89], %151 {strides = array<i32>} : memref<144x512xbf16, #tpu.memory_space<vmem>>, vector<16x256xbf16>,
    %c255_i32_90 = arith.constant 255 : i32
    %153 = tpu.dynamic_rotate %130 by %c255_i32_90 dim 1 : vector<16x256xf32>, i32 -> vector<16x256xf32>
    %154 = vector.broadcast %11 : vector<1x256xf32> to vector<16x256xf32>
    %155 = arith.mulf %153, %154 : vector<16x256xf32>
    %156 = arith.truncf %155 : vector<16x256xf32> to vector<16x256xbf16>
    %c80_91 = arith.constant 80 : index
    %c256_92 = arith.constant 256 : index
    %157 = vector.load %arg6[%c80_91, %c256_92] : memref<144x512xbf16, #tpu.memory_space<vmem>>, vector<16x256xbf16>
    tpu.vector_store %arg6[%c80_91, %c256_92], %156 {strides = array<i32>} : memref<144x512xbf16, #tpu.memory_space<vmem>>, vector<16x256xbf16>,
    %c241_i32_93 = arith.constant 241 : i32
    %158 = tpu.dynamic_rotate %130 by %c241_i32_93 dim 1 : vector<16x256xf32>, i32 -> vector<16x256xf32>
    %159 = vector.broadcast %13 : vector<1x256xf32> to vector<16x256xf32>
    %160 = arith.mulf %158, %159 : vector<16x256xf32>
    %161 = arith.truncf %160 : vector<16x256xf32> to vector<16x256xbf16>
    %c96_94 = arith.constant 96 : index
    %c256_95 = arith.constant 256 : index
    %162 = vector.load %arg6[%c96_94, %c256_95] : memref<144x512xbf16, #tpu.memory_space<vmem>>, vector<16x256xbf16>
    tpu.vector_store %arg6[%c96_94, %c256_95], %161 {strides = array<i32>} : memref<144x512xbf16, #tpu.memory_space<vmem>>, vector<16x256xbf16>,
    %c240_i32_96 = arith.constant 240 : i32
    %163 = tpu.dynamic_rotate %130 by %c240_i32_96 dim 1 : vector<16x256xf32>, i32 -> vector<16x256xf32>
    %164 = vector.broadcast %15 : vector<1x256xf32> to vector<16x256xf32>
    %165 = arith.mulf %163, %164 : vector<16x256xf32>
    %166 = arith.truncf %165 : vector<16x256xf32> to vector<16x256xbf16>
    %c112_97 = arith.constant 112 : index
    %c256_98 = arith.constant 256 : index
    %167 = vector.load %arg6[%c112_97, %c256_98] : memref<144x512xbf16, #tpu.memory_space<vmem>>, vector<16x256xbf16>
    tpu.vector_store %arg6[%c112_97, %c256_98], %166 {strides = array<i32>} : memref<144x512xbf16, #tpu.memory_space<vmem>>, vector<16x256xbf16>,
    %c239_i32_99 = arith.constant 239 : i32
    %168 = tpu.dynamic_rotate %130 by %c239_i32_99 dim 1 : vector<16x256xf32>, i32 -> vector<16x256xf32>
    %169 = vector.broadcast %17 : vector<1x256xf32> to vector<16x256xf32>
    %170 = arith.mulf %168, %169 : vector<16x256xf32>
    %171 = arith.truncf %170 : vector<16x256xf32> to vector<16x256xbf16>
    %c128_100 = arith.constant 128 : index
    %c256_101 = arith.constant 256 : index
    %172 = vector.load %arg6[%c128_100, %c256_101] : memref<144x512xbf16, #tpu.memory_space<vmem>>, vector<16x256xbf16>
    tpu.vector_store %arg6[%c128_100, %c256_101], %171 {strides = array<i32>} : memref<144x512xbf16, #tpu.memory_space<vmem>>, vector<16x256xbf16>,
    %c144_102 = arith.constant 144 : index
    %c256_103 = arith.constant 256 : index
    %173 = vector.load %arg7[%c144_102, %c256_103] : memref<160x512xbf16, #tpu.memory_space<vmem>>, vector<16x256xbf16>
    tpu.vector_store %arg7[%c144_102, %c256_103], %124 {strides = array<i32>} : memref<160x512xbf16, #tpu.memory_space<vmem>>, vector<16x256xbf16>,
    %c0_104 = arith.constant 0 : index
    %c256_105 = arith.constant 256 : index
    %174 = vector.load %arg6[%c0_104, %c256_105] : memref<144x512xbf16, #tpu.memory_space<vmem>>, vector<144x256xbf16>
    %cst_106 = arith.constant dense<0.000000e+00> : vector<16x256xf32>
    %175 = tpu.matmul %0, %174, %cst_106 {dimension_numbers = #tpu.dot_dimension_numbers<[1], [0], [0], [1], [0, 0, 1, 1], [], []>} : vector<16x144xbf16>, vector<144x256xbf16>, vector<16x256xf32> -> vector<16x256xf32>
    %cst_107 = arith.constant 0.000000e+00 : f32
    %176 = vector.broadcast %cst_107 : f32 to vector<16x256xf32>
    %177 = arith.cmpf oge, %175, %176 : vector<16x256xf32>
    %cst_108 = arith.constant 2.000000e-01 : f32
    %178 = vector.broadcast %cst_108 : f32 to vector<16x256xf32>
    %179 = arith.mulf %178, %175 : vector<16x256xf32>
    %180 = arith.select %177, %175, %179 : vector<16x256xi1>, vector<16x256xf32>
    %c17_i32_109 = arith.constant 17 : i32
    %181 = tpu.dynamic_rotate %180 by %c17_i32_109 dim 1 : vector<16x256xf32>, i32 -> vector<16x256xf32>
    %182 = vector.broadcast %3 : vector<1x256xf32> to vector<16x256xf32>
    %183 = arith.mulf %181, %182 : vector<16x256xf32>
    %184 = arith.truncf %183 : vector<16x256xf32> to vector<16x256xbf16>
    %c0_110 = arith.constant 0 : index
    %c256_111 = arith.constant 256 : index
    %185 = vector.load %arg7[%c0_110, %c256_111] : memref<160x512xbf16, #tpu.memory_space<vmem>>, vector<16x256xbf16>
    tpu.vector_store %arg7[%c0_110, %c256_111], %184 {strides = array<i32>} : memref<160x512xbf16, #tpu.memory_space<vmem>>, vector<16x256xbf16>,
    %c16_i32_112 = arith.constant 16 : i32
    %186 = tpu.dynamic_rotate %180 by %c16_i32_112 dim 1 : vector<16x256xf32>, i32 -> vector<16x256xf32>
    %187 = vector.broadcast %5 : vector<1x256xf32> to vector<16x256xf32>
    %188 = arith.mulf %186, %187 : vector<16x256xf32>
    %189 = arith.truncf %188 : vector<16x256xf32> to vector<16x256xbf16>
    %c16_113 = arith.constant 16 : index
    %c256_114 = arith.constant 256 : index
    %190 = vector.load %arg7[%c16_113, %c256_114] : memref<160x512xbf16, #tpu.memory_space<vmem>>, vector<16x256xbf16>
    tpu.vector_store %arg7[%c16_113, %c256_114], %189 {strides = array<i32>} : memref<160x512xbf16, #tpu.memory_space<vmem>>, vector<16x256xbf16>,
    %c15_i32_115 = arith.constant 15 : i32
    %191 = tpu.dynamic_rotate %180 by %c15_i32_115 dim 1 : vector<16x256xf32>, i32 -> vector<16x256xf32>
    %192 = vector.broadcast %7 : vector<1x256xf32> to vector<16x256xf32>
    %193 = arith.mulf %191, %192 : vector<16x256xf32>
    %194 = arith.truncf %193 : vector<16x256xf32> to vector<16x256xbf16>
    %c32_116 = arith.constant 32 : index
    %c256_117 = arith.constant 256 : index
    %195 = vector.load %arg7[%c32_116, %c256_117] : memref<160x512xbf16, #tpu.memory_space<vmem>>, vector<16x256xbf16>
    tpu.vector_store %arg7[%c32_116, %c256_117], %194 {strides = array<i32>} : memref<160x512xbf16, #tpu.memory_space<vmem>>, vector<16x256xbf16>,
    %c1_i32_118 = arith.constant 1 : i32
    %196 = tpu.dynamic_rotate %180 by %c1_i32_118 dim 1 : vector<16x256xf32>, i32 -> vector<16x256xf32>
    %197 = vector.broadcast %9 : vector<1x256xf32> to vector<16x256xf32>
    %198 = arith.mulf %196, %197 : vector<16x256xf32>
    %199 = arith.truncf %198 : vector<16x256xf32> to vector<16x256xbf16>
    %c48_119 = arith.constant 48 : index
    %c256_120 = arith.constant 256 : index
    %200 = vector.load %arg7[%c48_119, %c256_120] : memref<160x512xbf16, #tpu.memory_space<vmem>>, vector<16x256xbf16>
    tpu.vector_store %arg7[%c48_119, %c256_120], %199 {strides = array<i32>} : memref<160x512xbf16, #tpu.memory_space<vmem>>, vector<16x256xbf16>,
    %201 = arith.truncf %180 : vector<16x256xf32> to vector<16x256xbf16>
    %c64_121 = arith.constant 64 : index
    %c256_122 = arith.constant 256 : index
    %202 = vector.load %arg7[%c64_121, %c256_122] : memref<160x512xbf16, #tpu.memory_space<vmem>>, vector<16x256xbf16>
    tpu.vector_store %arg7[%c64_121, %c256_122], %201 {strides = array<i32>} : memref<160x512xbf16, #tpu.memory_space<vmem>>, vector<16x256xbf16>,
    %c255_i32_123 = arith.constant 255 : i32
    %203 = tpu.dynamic_rotate %180 by %c255_i32_123 dim 1 : vector<16x256xf32>, i32 -> vector<16x256xf32>
    %204 = vector.broadcast %11 : vector<1x256xf32> to vector<16x256xf32>
    %205 = arith.mulf %203, %204 : vector<16x256xf32>
    %206 = arith.truncf %205 : vector<16x256xf32> to vector<16x256xbf16>
    %c80_124 = arith.constant 80 : index
    %c256_125 = arith.constant 256 : index
    %207 = vector.load %arg7[%c80_124, %c256_125] : memref<160x512xbf16, #tpu.memory_space<vmem>>, vector<16x256xbf16>
    tpu.vector_store %arg7[%c80_124, %c256_125], %206 {strides = array<i32>} : memref<160x512xbf16, #tpu.memory_space<vmem>>, vector<16x256xbf16>,
    %c241_i32_126 = arith.constant 241 : i32
    %208 = tpu.dynamic_rotate %180 by %c241_i32_126 dim 1 : vector<16x256xf32>, i32 -> vector<16x256xf32>
    %209 = vector.broadcast %13 : vector<1x256xf32> to vector<16x256xf32>
    %210 = arith.mulf %208, %209 : vector<16x256xf32>
    %211 = arith.truncf %210 : vector<16x256xf32> to vector<16x256xbf16>
    %c96_127 = arith.constant 96 : index
    %c256_128 = arith.constant 256 : index
    %212 = vector.load %arg7[%c96_127, %c256_128] : memref<160x512xbf16, #tpu.memory_space<vmem>>, vector<16x256xbf16>
    tpu.vector_store %arg7[%c96_127, %c256_128], %211 {strides = array<i32>} : memref<160x512xbf16, #tpu.memory_space<vmem>>, vector<16x256xbf16>,
    %c240_i32_129 = arith.constant 240 : i32
    %213 = tpu.dynamic_rotate %180 by %c240_i32_129 dim 1 : vector<16x256xf32>, i32 -> vector<16x256xf32>
    %214 = vector.broadcast %15 : vector<1x256xf32> to vector<16x256xf32>
    %215 = arith.mulf %213, %214 : vector<16x256xf32>
    %216 = arith.truncf %215 : vector<16x256xf32> to vector<16x256xbf16>
    %c112_130 = arith.constant 112 : index
    %c256_131 = arith.constant 256 : index
    %217 = vector.load %arg7[%c112_130, %c256_131] : memref<160x512xbf16, #tpu.memory_space<vmem>>, vector<16x256xbf16>
    tpu.vector_store %arg7[%c112_130, %c256_131], %216 {strides = array<i32>} : memref<160x512xbf16, #tpu.memory_space<vmem>>, vector<16x256xbf16>,
    %c239_i32_132 = arith.constant 239 : i32
    %218 = tpu.dynamic_rotate %180 by %c239_i32_132 dim 1 : vector<16x256xf32>, i32 -> vector<16x256xf32>
    %219 = vector.broadcast %17 : vector<1x256xf32> to vector<16x256xf32>
    %220 = arith.mulf %218, %219 : vector<16x256xf32>
    %221 = arith.truncf %220 : vector<16x256xf32> to vector<16x256xbf16>
    %c128_133 = arith.constant 128 : index
    %c256_134 = arith.constant 256 : index
    %222 = vector.load %arg7[%c128_133, %c256_134] : memref<160x512xbf16, #tpu.memory_space<vmem>>, vector<16x256xbf16>
    tpu.vector_store %arg7[%c128_133, %c256_134], %221 {strides = array<i32>} : memref<160x512xbf16, #tpu.memory_space<vmem>>, vector<16x256xbf16>,
    %c0_135 = arith.constant 0 : index
    %c256_136 = arith.constant 256 : index
    %223 = vector.load %arg7[%c0_135, %c256_136] : memref<160x512xbf16, #tpu.memory_space<vmem>>, vector<160x256xbf16>
    %cst_137 = arith.constant dense<0.000000e+00> : vector<8x256xf32>
    %224 = tpu.matmul %1, %223, %cst_137 {dimension_numbers = #tpu.dot_dimension_numbers<[1], [0], [0], [1], [0, 0, 1, 1], [], []>} : vector<8x160xbf16>, vector<160x256xbf16>, vector<8x256xf32> -> vector<8x256xf32>
    %c1_138 = arith.constant 1 : index
    %c0_139 = arith.constant 0 : index
    %c0_140 = arith.constant 0 : index
    %225 = vector.load %arg5[%c1_138, %c0_139, %c0_140] : memref<2x8x256xf32, #tpu.memory_space<vmem>>, vector<1x8x256xf32>
    %226 = vector.shape_cast %225 : vector<1x8x256xf32> to vector<8x256xf32>
    %227 = vector.shape_cast %224 : vector<8x256xf32> to vector<1x8x256xf32>
    tpu.vector_store %arg5[%c1_138, %c0_139, %c0_140], %227 {strides = array<i32>} : memref<2x8x256xf32, #tpu.memory_space<vmem>>, vector<1x8x256xf32>,
    return
  }
  func.func @transform_0(%arg0: i32) -> (i32, i32, i32) {
    %c0_i32 = arith.constant 0 : i32
    %c0_i32_0 = arith.constant 0 : i32
    %c0_i32_1 = arith.constant 0 : i32
    return %arg0, %c0_i32, %c0_i32_0 : i32, i32, i32
  }
  func.func @transform_1(%arg0: i32) -> (i32, i32, i32) {
    %c0_i32 = arith.constant 0 : i32
    %c0_i32_0 = arith.constant 0 : i32
    %c0_i32_1 = arith.constant 0 : i32
    %c0_i32_2 = arith.constant 0 : i32
    return %c0_i32, %c0_i32_0, %c0_i32_1 : i32, i32, i32
  }
  func.func @transform_2(%arg0: i32) -> (i32, i32) {
    %c0_i32 = arith.constant 0 : i32
    %c0_i32_0 = arith.constant 0 : i32
    %c0_i32_1 = arith.constant 0 : i32
    return %c0_i32, %c0_i32_0 : i32, i32
  }
  func.func @transform_3(%arg0: i32) -> (i32, i32) {
    %c0_i32 = arith.constant 0 : i32
    %c0_i32_0 = arith.constant 0 : i32
    %c0_i32_1 = arith.constant 0 : i32
    return %c0_i32, %c0_i32_0 : i32, i32
  }
  func.func @transform_4(%arg0: i32) -> (i32, i32, i32) {
    %c0_i32 = arith.constant 0 : i32
    %c0_i32_0 = arith.constant 0 : i32
    %c0_i32_1 = arith.constant 0 : i32
    return %arg0, %c0_i32, %c0_i32_0 : i32, i32, i32
  }
}

</mosaic_0001>

<llo_original>
// kernel: tpu_custom_call.1
$region0: #{tpu_custom_call.1}
  #allocation0 [shape = 'u32[]', space=smem, size = 0x4, offset = 0x4, fixed_abs, tag = 'smem constant byte address 0x4 - core index']
  #allocation1 [shape = 'u32[72,128]{1,0:T(1,128)}', space=vmem, size = 0x9000, scoped, tag = 'internal scratch']
  #allocation2 [shape = 'bf16[144,512]{1,0:T(8,128)(2,1)}', space=vmem, size = 0x24000, scoped, tag = 'scratch operand']
  #allocation3 [shape = 'bf16[160,512]{1,0:T(8,128)(2,1)}', space=vmem, size = 0x28000, scoped, tag = 'scratch operand']
  %s0 = inlined_call_operand.hbm [shape: bf16[2,16,256], index: 0, kind: input, shape index: {}]
  %s1 = inlined_call_operand.hbm [shape: f32[9,1,256], index: 1, kind: input, shape index: {}]
  %s2 = inlined_call_operand.hbm [shape: bf16[16,144], index: 2, kind: input, shape index: {}]
  %s3 = inlined_call_operand.hbm [shape: bf16[8,160], index: 3, kind: input, shape index: {}]
  %s4 = inlined_call_operand.hbm [shape: f32[2,8,256], index: 4, kind: output, shape index: {}]
  %s5 = sld [smem:[#allocation0]]
  $region42: #{tpu_custom_call.1} parent=0
    _
  %s7 = ssub.s32 1, %s5
  %s8 = scalar_select 0, %s7, %s5
  $region1: #{tpu_custom_call.1} parent=0
    #allocation4 [shape = 'u8[16384]{0}', space=vmem, size = 0x4000, scoped, tag = 'input window, operand 0, single buffered']
    #allocation5 [shape = 's32[1]{0}', space=sflag, size = 0x4, scoped, tag = 'scoped memory for tpu_custom_call.1']
    #allocation6 [shape = 's32[1]{0}', space=sflag, size = 0x4, scoped, tag = 'scoped memory for tpu_custom_call.1']
    #allocation7 [shape = 'u8[9216]{0}', space=vmem, size = 0x2400, scoped, tag = 'input window, operand 1, single buffered']
    #allocation8 [shape = 's32[1]{0}', space=sflag, size = 0x4, scoped, tag = 'scoped memory for tpu_custom_call.1']
    #allocation9 [shape = 'u8[8192]{0}', space=vmem, size = 0x2000, scoped, tag = 'input window, operand 2, single buffered']
    #allocation10 [shape = 'u8[4096]{0}', space=vmem, size = 0x1000, scoped, tag = 'input window, operand 3, single buffered']
    #allocation11 [shape = 's32[1]{0}', space=sflag, size = 0x4, scoped, tag = 'scoped memory for tpu_custom_call.1']
    #allocation12 [shape = 'u8[16384]{0}', space=vmem, size = 0x4000, scoped, tag = 'output window, operand 0, single buffered']
    %9 = vsyncpa [#allocation5], 0
    %10 = vsyncpa [#allocation8], 0
    %11 = vsyncpa [#allocation11], 0
    %12 = vsyncpa [#allocation6], 0
    // Predicated region
    $region2: #{tpu_custom_call.1} parent=1 // pred_check
      _
    $region3: #{tpu_custom_call.1} parent=1 // pred_check_branch
      %14 = sbr.rel (0) target = $region5
    $region4: #{tpu_custom_call.1} parent=1 // pred_region
      %16 = vsyncadd [#allocation5], 0
      %s17 = sshll.u32 %s0, 4
      %s18 = int_to_ptr.hbm [resolvable:$true] %s17
      %s19 = sshll.u32 [#allocation4], 4
      %s20 = int_to_ptr.vmem [resolvable:$true] %s19
      %25 = dma.hbm_to_vmem [thread:$0]  %s18, 512, %s20, [#allocation5], 128, 128, 8
    $region5: #{tpu_custom_call.1} parent=1 // pred_fallthru
      _
    // Predicated region
    $region6: #{tpu_custom_call.1} parent=1 // pred_check
      _
    $region7: #{tpu_custom_call.1} parent=1 // pred_check_branch
      %27 = sbr.rel (0) target = $region9
    $region8: #{tpu_custom_call.1} parent=1 // pred_region
      %29 = vsyncadd [#allocation8], 0
      %s30 = sshll.u32 %s1, 4
      %s31 = int_to_ptr.hbm [resolvable:$true] %s30
      %s32 = sshll.u32 [#allocation7], 4
      %s33 = int_to_ptr.vmem [resolvable:$true] %s32
      %38 = dma.hbm_to_vmem [thread:$0]  %s31, 288, %s33, [#allocation8], 32, 32, 2
    $region9: #{tpu_custom_call.1} parent=1 // pred_fallthru
      _
    // Predicated region
    $region10: #{tpu_custom_call.1} parent=1 // pred_check
      _
    $region11: #{tpu_custom_call.1} parent=1 // pred_check_branch
      %40 = sbr.rel (0) target = $region13
    $region12: #{tpu_custom_call.1} parent=1 // pred_region
      %42 = vsyncadd [#allocation8], 0
      %s43 = sshll.u32 %s2, 4
      %s44 = int_to_ptr.hbm [resolvable:$true] %s43
      %s45 = sshll.u32 [#allocation9], 4
      %s46 = int_to_ptr.vmem [resolvable:$true] %s45
      %51 = dma.hbm_to_vmem [thread:$0]  %s44, 256, %s46, [#allocation8], 128, 128, 8
    $region13: #{tpu_custom_call.1} parent=1 // pred_fallthru
      _
    // Predicated region
    $region14: #{tpu_custom_call.1} parent=1 // pred_check
      _
    $region15: #{tpu_custom_call.1} parent=1 // pred_check_branch
      %53 = sbr.rel (0) target = $region17
    $region16: #{tpu_custom_call.1} parent=1 // pred_region
      %55 = vsyncadd [#allocation11], 0
      %s57 = sshll.u32 %s3, 4
      %s58 = int_to_ptr.hbm [resolvable:$true] %s57
      %s59 = sshll.u32 [#allocation10], 4
      %s60 = int_to_ptr.vmem [resolvable:$true] %s59
      %62 = dma.hbm_to_vmem [thread:$0]  %s58, 128, %s60, [#allocation11]
    $region17: #{tpu_custom_call.1} parent=1 // pred_fallthru
      _
    // Predicated region
    $region18: #{tpu_custom_call.1} parent=1 // pred_check
      _
    $region19: #{tpu_custom_call.1} parent=1 // pred_check_branch
      %64 = sbr.rel (0) target = $region21
    $region20: #{tpu_custom_call.1} parent=1 // pred_region
      %66 = dma.done [#allocation5], 512
    $region21: #{tpu_custom_call.1} parent=1 // pred_fallthru
      _
    // Predicated region
    $region22: #{tpu_custom_call.1} parent=1 // pred_check
      _
    $region23: #{tpu_custom_call.1} parent=1 // pred_check_branch
      %68 = sbr.rel (0) target = $region25
    $region24: #{tpu_custom_call.1} parent=1 // pred_region
      %70 = dma.done [#allocation8], 288
    $region25: #{tpu_custom_call.1} parent=1 // pred_fallthru
      _
    // Predicated region
    $region26: #{tpu_custom_call.1} parent=1 // pred_check
      _
    $region27: #{tpu_custom_call.1} parent=1 // pred_check_branch
      %72 = sbr.rel (0) target = $region29
    $region28: #{tpu_custom_call.1} parent=1 // pred_region
      %74 = dma.done [#allocation8], 256
    $region29: #{tpu_custom_call.1} parent=1 // pred_fallthru
      _
    // Predicated region
    $region30: #{tpu_custom_call.1} parent=1 // pred_check
      _
    $region31: #{tpu_custom_call.1} parent=1 // pred_check_branch
      %76 = sbr.rel (0) target = $region33
    $region32: #{tpu_custom_call.1} parent=1 // pred_region
      %78 = dma.done [#allocation11], 128
    $region33: #{tpu_custom_call.1} parent=1 // pred_fallthru
      _
    %v80 = vld [vmem:[#allocation9] sm:$0xff]
    %v81 = vld [vmem:[#allocation9 + $0x8] sm:$0xff]
    %v82 = vld [vmem:[#allocation10] sm:$0xff]
    %v83 = vld [vmem:[#allocation7] sm:$0x3]
    %s84 = scalar_lea.vmem [#allocation7], 2
    %v85 = vld [vmem:[%s84] sm:$0x3]
    %s86 = scalar_lea.vmem [#allocation7], 4
    %v87 = vld [vmem:[%s86] sm:$0x3]
    %s88 = scalar_lea.vmem [#allocation7], 6
    %v89 = vld [vmem:[%s88] sm:$0x3]
    %s90 = scalar_lea.vmem [#allocation7], 10
    %v91 = vld [vmem:[%s90] sm:$0x3]
    %s92 = scalar_lea.vmem [#allocation7], 12
    %v93 = vld [vmem:[%s92] sm:$0x3]
    %s94 = scalar_lea.vmem [#allocation7], 14
    %v95 = vld [vmem:[%s94] sm:$0x3]
    %s96 = scalar_lea.vmem [#allocation7], 16
    %v97 = vld [vmem:[%s96] sm:$0x3]
    %v98 = vld [vmem:[#allocation4] sm:$0xff]
    %v99 = vld [vmem:[#allocation4 + $0x8] sm:$0xff]
    %v100 = vunpack.c.l.bf16 %v98
    %v101 = vunpack.c.h.bf16 %v98
    %v102 = vunpack.c.l.bf16 %v99
    %v103 = vunpack.c.h.bf16 %v99
    %vm104 = vcmp.ge.f32.partialorder %v100, 0.0
    %vm105 = vcmp.ge.f32.partialorder %v101, 0.0
    %vm106 = vcmp.ge.f32.partialorder %v102, 0.0
    %vm107 = vcmp.ge.f32.partialorder %v103, 0.0
    %v108 = vmul.f32 %v100, 0.2
    %v109 = vmul.f32 %v101, 0.2
    %v110 = vmul.f32 %v102, 0.2
    %v111 = vmul.f32 %v103, 0.2
    %v112 = vsel %vm104, %v100, %v108
    %v113 = vsel %vm105, %v101, %v109
    %v114 = vsel %vm106, %v102, %v110
    %v115 = vsel %vm107, %v103, %v111
    %116 = vrot.lane.b32.xlu0 %v112, 17
    %v117 = vpop.permute.xlu0 %116
    %118 = vrot.lane.b32.xlu0 %v114, 17
    %v119 = vpop.permute.xlu0 %118
    %120 = vrot.lane.b32.xlu0 %v113, 17
    %v121 = vpop.permute.xlu0 %120
    %122 = vrot.lane.b32.xlu0 %v115, 17
    %v123 = vpop.permute.xlu0 %122
    %v124 = vlaneseq
    %v125 = vand.u32 %v124, 127
    %vm126 = vcmp.lt.s32.totalorder %v125, 17
    %v127 = vsel %vm126, %v117, %v121
    %v128 = vsel %vm126, %v119, %v123
    %v129 = vsel %vm126, %v121, %v117
    %v130 = vsel %vm126, %v123, %v119
    %v132 = vperm.slane %v83, 0
    %v133 = vperm.slane %v83, 1
    %v136 = vmul.f32 %v129, %v132
    %v137 = vmul.f32 %v127, %v133
    %v138 = vmul.f32 %v130, %v132
    %v139 = vmul.f32 %v128, %v133
    %v140 = vpack.c.bf16 %v137, %v136
    %v141 = vpack.c.bf16 %v139, %v138
    %142 = vst [vmem:[#allocation2] sm:$0xff] %v140
    %143 = vst [vmem:[#allocation2 + $0x10] sm:$0xff] %v141
    %144 = vrot.lane.b32.xlu0 %v112, 16
    %v145 = vpop.permute.xlu0 %144
    %146 = vrot.lane.b32.xlu0 %v114, 16
    %v147 = vpop.permute.xlu0 %146
    %148 = vrot.lane.b32.xlu0 %v113, 16
    %v149 = vpop.permute.xlu0 %148
    %150 = vrot.lane.b32.xlu0 %v115, 16
    %v151 = vpop.permute.xlu0 %150
    %vm152 = vcmp.lt.s32.totalorder %v125, 16
    %v153 = vsel %vm152, %v145, %v149
    %v154 = vsel %vm152, %v147, %v151
    %v155 = vsel %vm152, %v149, %v145
    %v156 = vsel %vm152, %v151, %v147
    %v158 = vperm.slane %v85, 0
    %v159 = vperm.slane %v85, 1
    %v162 = vmul.f32 %v155, %v158
    %v163 = vmul.f32 %v153, %v159
    %v164 = vmul.f32 %v156, %v158
    %v165 = vmul.f32 %v154, %v159
    %v166 = vpack.c.bf16 %v163, %v162
    %v167 = vpack.c.bf16 %v165, %v164
    %168 = vst [vmem:[#allocation2 + $0x20] sm:$0xff] %v166
    %169 = vst [vmem:[#allocation2 + $0x30] sm:$0xff] %v167
    %170 = vrot.lane.b32.xlu0 %v112, 15
    %v171 = vpop.permute.xlu0 %170
    %172 = vrot.lane.b32.xlu0 %v114, 15
    %v173 = vpop.permute.xlu0 %172
    %174 = vrot.lane.b32.xlu0 %v113, 15
    %v175 = vpop.permute.xlu0 %174
    %176 = vrot.lane.b32.xlu0 %v115, 15
    %v177 = vpop.permute.xlu0 %176
    %vm178 = vcmp.lt.s32.totalorder %v125, 15
    %v179 = vsel %vm178, %v171, %v175
    %v180 = vsel %vm178, %v173, %v177
    %v181 = vsel %vm178, %v175, %v171
    %v182 = vsel %vm178, %v177, %v173
    %v184 = vperm.slane %v87, 0
    %v185 = vperm.slane %v87, 1
    %v188 = vmul.f32 %v181, %v184
    %v189 = vmul.f32 %v179, %v185
    %v190 = vmul.f32 %v182, %v184
    %v191 = vmul.f32 %v180, %v185
    %v192 = vpack.c.bf16 %v189, %v188
    %v193 = vpack.c.bf16 %v191, %v190
    %194 = vst [vmem:[#allocation2 + $0x40] sm:$0xff] %v192
    %195 = vst [vmem:[#allocation2 + $0x50] sm:$0xff] %v193
    %196 = vrot.lane.b32.xlu0 %v112, 1
    %v197 = vpop.permute.xlu0 %196
    %198 = vrot.lane.b32.xlu0 %v114, 1
    %v199 = vpop.permute.xlu0 %198
    %200 = vrot.lane.b32.xlu0 %v113, 1
    %v201 = vpop.permute.xlu0 %200
    %202 = vrot.lane.b32.xlu0 %v115, 1
    %v203 = vpop.permute.xlu0 %202
    %vm204 = vcmp.lt.s32.totalorder %v125, 1
    %v205 = vsel %vm204, %v197, %v201
    %v206 = vsel %vm204, %v199, %v203
    %v207 = vsel %vm204, %v201, %v197
    %v208 = vsel %vm204, %v203, %v199
    %v210 = vperm.slane %v89, 0
    %v211 = vperm.slane %v89, 1
    %v214 = vmul.f32 %v207, %v210
    %v215 = vmul.f32 %v205, %v211
    %v216 = vmul.f32 %v208, %v210
    %v217 = vmul.f32 %v206, %v211
    %v218 = vpack.c.bf16 %v215, %v214
    %v219 = vpack.c.bf16 %v217, %v216
    %220 = vst [vmem:[#allocation2 + $0x60] sm:$0xff] %v218
    %221 = vst [vmem:[#allocation2 + $0x70] sm:$0xff] %v219
    %v222 = vpack.c.bf16 %v113, %v112
    %v223 = vpack.c.bf16 %v115, %v114
    %224 = vst [vmem:[#allocation2 + $0x80] sm:$0xff] %v222
    %225 = vst [vmem:[#allocation2 + $0x90] sm:$0xff] %v223
    %226 = vrot.lane.b32.xlu0 %v112, 127
    %v227 = vpop.permute.xlu0 %226
    %228 = vrot.lane.b32.xlu0 %v114, 127
    %v229 = vpop.permute.xlu0 %228
    %230 = vrot.lane.b32.xlu0 %v113, 127
    %v231 = vpop.permute.xlu0 %230
    %232 = vrot.lane.b32.xlu0 %v115, 127
    %v233 = vpop.permute.xlu0 %232
    %vm234 = vcmp.lt.s32.totalorder %v125, 127
    %v235 = vsel %vm234, %v227, %v231
    %v236 = vsel %vm234, %v229, %v233
    %v237 = vsel %vm234, %v231, %v227
    %v238 = vsel %vm234, %v233, %v229
    %v240 = vperm.slane %v91, 0
    %v241 = vperm.slane %v91, 1
    %v244 = vmul.f32 %v235, %v240
    %v245 = vmul.f32 %v237, %v241
    %v246 = vmul.f32 %v236, %v240
    %v247 = vmul.f32 %v238, %v241
    %v248 = vpack.c.bf16 %v245, %v244
    %v249 = vpack.c.bf16 %v247, %v246
    %250 = vst [vmem:[#allocation2 + $0xa0] sm:$0xff] %v248
    %251 = vst [vmem:[#allocation2 + $0xb0] sm:$0xff] %v249
    %252 = vrot.lane.b32.xlu0 %v112, 113
    %v253 = vpop.permute.xlu0 %252
    %254 = vrot.lane.b32.xlu0 %v114, 113
    %v255 = vpop.permute.xlu0 %254
    %256 = vrot.lane.b32.xlu0 %v113, 113
    %v257 = vpop.permute.xlu0 %256
    %258 = vrot.lane.b32.xlu0 %v115, 113
    %v259 = vpop.permute.xlu0 %258
    %vm260 = vcmp.lt.s32.totalorder %v125, 113
    %v261 = vsel %vm260, %v253, %v257
    %v262 = vsel %vm260, %v255, %v259
    %v263 = vsel %vm260, %v257, %v253
    %v264 = vsel %vm260, %v259, %v255
    %v266 = vperm.slane %v93, 0
    %v267 = vperm.slane %v93, 1
    %v270 = vmul.f32 %v261, %v266
    %v271 = vmul.f32 %v263, %v267
    %v272 = vmul.f32 %v262, %v266
    %v273 = vmul.f32 %v264, %v267
    %v274 = vpack.c.bf16 %v271, %v270
    %v275 = vpack.c.bf16 %v273, %v272
    %276 = vst [vmem:[#allocation2 + $0xc0] sm:$0xff] %v274
    %277 = vst [vmem:[#allocation2 + $0xd0] sm:$0xff] %v275
    %278 = vrot.lane.b32.xlu0 %v112, 112
    %v279 = vpop.permute.xlu0 %278
    %280 = vrot.lane.b32.xlu0 %v114, 112
    %v281 = vpop.permute.xlu0 %280
    %282 = vrot.lane.b32.xlu0 %v113, 112
    %v283 = vpop.permute.xlu0 %282
    %284 = vrot.lane.b32.xlu0 %v115, 112
    %v285 = vpop.permute.xlu0 %284
    %vm286 = vcmp.lt.s32.totalorder %v125, 112
    %v287 = vsel %vm286, %v279, %v283
    %v288 = vsel %vm286, %v281, %v285
    %v289 = vsel %vm286, %v283, %v279
    %v290 = vsel %vm286, %v285, %v281
    %v292 = vperm.slane %v95, 0
    %v293 = vperm.slane %v95, 1
    %v296 = vmul.f32 %v287, %v292
    %v297 = vmul.f32 %v289, %v293
    %v298 = vmul.f32 %v288, %v292
    %v299 = vmul.f32 %v290, %v293
    %v300 = vpack.c.bf16 %v297, %v296
    %v301 = vpack.c.bf16 %v299, %v298
    %302 = vst [vmem:[#allocation2 + $0xe0] sm:$0xff] %v300
    %303 = vst [vmem:[#allocation2 + $0xf0] sm:$0xff] %v301
    %304 = vrot.lane.b32.xlu0 %v112, 111
    %v305 = vpop.permute.xlu0 %304
    %306 = vrot.lane.b32.xlu0 %v114, 111
    %v307 = vpop.permute.xlu0 %306
    %308 = vrot.lane.b32.xlu0 %v113, 111
    %v309 = vpop.permute.xlu0 %308
    %310 = vrot.lane.b32.xlu0 %v115, 111
    %v311 = vpop.permute.xlu0 %310
    %vm312 = vcmp.lt.s32.totalorder %v125, 111
    %v313 = vsel %vm312, %v305, %v309
    %v314 = vsel %vm312, %v307, %v311
    %v315 = vsel %vm312, %v309, %v305
    %v316 = vsel %vm312, %v311, %v307
    %v318 = vperm.slane %v97, 0
    %v319 = vperm.slane %v97, 1
    %v322 = vmul.f32 %v313, %v318
    %v323 = vmul.f32 %v315, %v319
    %v324 = vmul.f32 %v314, %v318
    %v325 = vmul.f32 %v316, %v319
    %v326 = vpack.c.bf16 %v323, %v322
    %v327 = vpack.c.bf16 %v325, %v324
    %328 = vst [vmem:[#allocation2 + $0x100] sm:$0xff] %v326
    %329 = vst [vmem:[#allocation2 + $0x110] sm:$0xff] %v327
    %330 = vst [vmem:[#allocation3 + $0x120] sm:$0xff] %v98
    %331 = vst [vmem:[#allocation3 + $0x130] sm:$0xff] %v99
    %v332 = vld [vmem:[#allocation2] sm:$0xff]
    %v333 = vld [vmem:[#allocation2 + $0x10] sm:$0xff]
    %v334 = vld [vmem:[#allocation2 + $0x20] sm:$0xff]
    %v335 = vld [vmem:[#allocation2 + $0x30] sm:$0xff]
    %v336 = vld [vmem:[#allocation2 + $0x40] sm:$0xff]
    %v337 = vld [vmem:[#allocation2 + $0x50] sm:$0xff]
    %v338 = vld [vmem:[#allocation2 + $0x60] sm:$0xff]
    %v339 = vld [vmem:[#allocation2 + $0x70] sm:$0xff]
    %v340 = vld [vmem:[#allocation2 + $0x80] sm:$0xff]
    %v341 = vld [vmem:[#allocation2 + $0x90] sm:$0xff]
    %v342 = vld [vmem:[#allocation2 + $0xa0] sm:$0xff]
    %v343 = vld [vmem:[#allocation2 + $0xb0] sm:$0xff]
    %v344 = vld [vmem:[#allocation2 + $0xc0] sm:$0xff]
    %v345 = vld [vmem:[#allocation2 + $0xd0] sm:$0xff]
    %v346 = vld [vmem:[#allocation2 + $0xe0] sm:$0xff]
    %v347 = vld [vmem:[#allocation2 + $0xf0] sm:$0xff]
    %v348 = vld [vmem:[#allocation2 + $0x100] sm:$0xff]
    %v349 = vld [vmem:[#allocation2 + $0x110] sm:$0xff]
    %v352 = vunpack.c.l.b16 %v80
    %v353 = vunpack.c.h.b16 %v80
    %v354 = vunpack.c.l.b16 %v81
    %v355 = vunpack.c.h.b16 %v81
    %v356 = vpack.c.b16 %v354, %v352
    %v357 = vpack.c.b16 %v355, %v353
    %v377 = vunpack.c.l.b16 %v332
    %v378 = vunpack.c.h.b16 %v332
    %v379 = vunpack.c.l.b16 %v333
    %v380 = vunpack.c.h.b16 %v333
    %v381 = vunpack.c.l.b16 %v334
    %v382 = vunpack.c.h.b16 %v334
    %v383 = vunpack.c.l.b16 %v335
    %v384 = vunpack.c.h.b16 %v335
    %v385 = vunpack.c.l.b16 %v336
    %v386 = vunpack.c.h.b16 %v336
    %v387 = vunpack.c.l.b16 %v337
    %v388 = vunpack.c.h.b16 %v337
    %v389 = vunpack.c.l.b16 %v338
    %v390 = vunpack.c.h.b16 %v338
    %v391 = vunpack.c.l.b16 %v339
    %v392 = vunpack.c.h.b16 %v339
    %v393 = vunpack.c.l.b16 %v340
    %v394 = vunpack.c.h.b16 %v340
    %v395 = vunpack.c.l.b16 %v341
    %v396 = vunpack.c.h.b16 %v341
    %v397 = vunpack.c.l.b16 %v342
    %v398 = vunpack.c.h.b16 %v342
    %v399 = vunpack.c.l.b16 %v343
    %v400 = vunpack.c.h.b16 %v343
    %v401 = vunpack.c.l.b16 %v344
    %v402 = vunpack.c.h.b16 %v344
    %v403 = vunpack.c.l.b16 %v345
    %v404 = vunpack.c.h.b16 %v345
    %v405 = vunpack.c.l.b16 %v346
    %v406 = vunpack.c.h.b16 %v346
    %v407 = vunpack.c.l.b16 %v347
    %v408 = vunpack.c.h.b16 %v347
    %v409 = vunpack.c.l.b16 %v348
    %v410 = vunpack.c.h.b16 %v348
    %v411 = vunpack.c.l.b16 %v349
    %v412 = vunpack.c.h.b16 %v349
    %v413 = vpack.c.b16 %v379, %v377
    %v414 = vpack.c.b16 %v380, %v378
    %v415 = vpack.c.b16 %v383, %v381
    %v416 = vpack.c.b16 %v384, %v382
    %v417 = vpack.c.b16 %v387, %v385
    %v418 = vpack.c.b16 %v388, %v386
    %v419 = vpack.c.b16 %v391, %v389
    %v420 = vpack.c.b16 %v392, %v390
    %v421 = vpack.c.b16 %v395, %v393
    %v422 = vpack.c.b16 %v396, %v394
    %v423 = vpack.c.b16 %v399, %v397
    %v424 = vpack.c.b16 %v400, %v398
    %v425 = vpack.c.b16 %v403, %v401
    %v426 = vpack.c.b16 %v404, %v402
    %v427 = vpack.c.b16 %v407, %v405
    %v428 = vpack.c.b16 %v408, %v406
    %v429 = vpack.c.b16 %v411, %v409
    %v430 = vpack.c.b16 %v412, %v410
    %vm449 = vcmask 130048
    %v451 = vsel %vm449, %v357, 0
    %453 = vmatpush.bf16.msra.mxu0 %v427
    %454 = vmatpush.bf16.msra.mxu0 %v425
    %455 = vmatpush.bf16.msra.mxu0 %v423
    %456 = vmatpush.bf16.msra.mxu0 %v421
    %457 = vmatpush.bf16.msra.mxu0 %v419
    %458 = vmatpush.bf16.msra.mxu0 %v417
    %459 = vmatpush.bf16.msra.mxu0 %v415
    %460 = vmatpush.bf16.msra.mxu0 %v413
    %461 = vmatmul.bf16.gmra.mxu0 %v356
    %v462 = vpop.f32.mrf.mxu0
    %v463 = vadd.f32 0.0, %v462
    %v464 = vpop.f32.mrf.mxu0
    %v465 = vadd.f32 0.0, %v464
    %466 = vdwg.mxu0
    %467 = vmatpush.bf16.msra.mxu0 0
    %468 = vmatpush.bf16.msra.mxu0 0
    %469 = vmatpush.bf16.msra.mxu0 0
    %470 = vmatpush.bf16.msra.mxu0 0
    %471 = vmatpush.bf16.msra.mxu0 0
    %472 = vmatpush.bf16.msra.mxu0 0
    %473 = vmatpush.bf16.msra.mxu0 0
    %474 = vmatpush.bf16.msra.mxu0 %v429
    %475 = vmatmul.bf16.gmra.mxu0 %v451
    %v476 = vpop.f32.mrf.mxu0
    %v477 = vadd.f32 %v463, %v476
    %v478 = vpop.f32.mrf.mxu0
    %v479 = vadd.f32 %v465, %v478
    %480 = vdwg.mxu0
    %481 = vmatpush.bf16.msra.mxu0 %v428
    %482 = vmatpush.bf16.msra.mxu0 %v426
    %483 = vmatpush.bf16.msra.mxu0 %v424
    %484 = vmatpush.bf16.msra.mxu0 %v422
    %485 = vmatpush.bf16.msra.mxu0 %v420
    %486 = vmatpush.bf16.msra.mxu0 %v418
    %487 = vmatpush.bf16.msra.mxu0 %v416
    %488 = vmatpush.bf16.msra.mxu0 %v414
    %489 = vmatmul.bf16.gmra.mxu0 %v356
    %v490 = vpop.f32.mrf.mxu0
    %v491 = vadd.f32 0.0, %v490
    %v492 = vpop.f32.mrf.mxu0
    %v493 = vadd.f32 0.0, %v492
    %494 = vdwg.mxu0
    %495 = vmatpush.bf16.msra.mxu0 0
    %496 = vmatpush.bf16.msra.mxu0 0
    %497 = vmatpush.bf16.msra.mxu0 0
    %498 = vmatpush.bf16.msra.mxu0 0
    %499 = vmatpush.bf16.msra.mxu0 0
    %500 = vmatpush.bf16.msra.mxu0 0
    %501 = vmatpush.bf16.msra.mxu0 0
    %502 = vmatpush.bf16.msra.mxu0 %v430
    %503 = vmatmul.bf16.gmra.mxu0 %v451
    %v504 = vpop.f32.mrf.mxu0
    %v505 = vadd.f32 %v491, %v504
    %v506 = vpop.f32.mrf.mxu0
    %v507 = vadd.f32 %v493, %v506
    %508 = vdwg.mxu0
    %vm509 = vcmp.ge.f32.partialorder %v477, 0.0
    %vm510 = vcmp.ge.f32.partialorder %v505, 0.0
    %vm511 = vcmp.ge.f32.partialorder %v479, 0.0
    %vm512 = vcmp.ge.f32.partialorder %v507, 0.0
    %v513 = vmul.f32 %v477, 0.2
    %v514 = vmul.f32 %v505, 0.2
    %v515 = vmul.f32 %v479, 0.2
    %v516 = vmul.f32 %v507, 0.2
    %v517 = vsel %vm509, %v477, %v513
    %v518 = vsel %vm510, %v505, %v514
    %v519 = vsel %vm511, %v479, %v515
    %v520 = vsel %vm512, %v507, %v516
    %521 = vrot.lane.b32.xlu0 %v517, 17
    %v522 = vpop.permute.xlu0 %521
    %523 = vrot.lane.b32.xlu0 %v519, 17
    %v524 = vpop.permute.xlu0 %523
    %525 = vrot.lane.b32.xlu0 %v518, 17
    %v526 = vpop.permute.xlu0 %525
    %527 = vrot.lane.b32.xlu0 %v520, 17
    %v528 = vpop.permute.xlu0 %527
    %v529 = vsel %vm126, %v522, %v526
    %v530 = vsel %vm126, %v524, %v528
    %v531 = vsel %vm126, %v526, %v522
    %v532 = vsel %vm126, %v528, %v524
    %v533 = vmul.f32 %v531, %v132
    %v534 = vmul.f32 %v529, %v133
    %v535 = vmul.f32 %v532, %v132
    %v536 = vmul.f32 %v530, %v133
    %v537 = vpack.c.bf16 %v534, %v533
    %v538 = vpack.c.bf16 %v536, %v535
    %539 = vst [vmem:[#allocation3] sm:$0xff] %v537
    %540 = vst [vmem:[#allocation3 + $0x10] sm:$0xff] %v538
    %541 = vrot.lane.b32.xlu0 %v517, 16
    %v542 = vpop.permute.xlu0 %541
    %543 = vrot.lane.b32.xlu0 %v519, 16
    %v544 = vpop.permute.xlu0 %543
    %545 = vrot.lane.b32.xlu0 %v518, 16
    %v546 = vpop.permute.xlu0 %545
    %547 = vrot.lane.b32.xlu0 %v520, 16
    %v548 = vpop.permute.xlu0 %547
    %v549 = vsel %vm152, %v542, %v546
    %v550 = vsel %vm152, %v544, %v548
    %v551 = vsel %vm152, %v546, %v542
    %v552 = vsel %vm152, %v548, %v544
    %v553 = vmul.f32 %v551, %v158
    %v554 = vmul.f32 %v549, %v159
    %v555 = vmul.f32 %v552, %v158
    %v556 = vmul.f32 %v550, %v159
    %v557 = vpack.c.bf16 %v554, %v553
    %v558 = vpack.c.bf16 %v556, %v555
    %559 = vst [vmem:[#allocation3 + $0x20] sm:$0xff] %v557
    %560 = vst [vmem:[#allocation3 + $0x30] sm:$0xff] %v558
    %561 = vrot.lane.b32.xlu0 %v517, 15
    %v562 = vpop.permute.xlu0 %561
    %563 = vrot.lane.b32.xlu0 %v519, 15
    %v564 = vpop.permute.xlu0 %563
    %565 = vrot.lane.b32.xlu0 %v518, 15
    %v566 = vpop.permute.xlu0 %565
    %567 = vrot.lane.b32.xlu0 %v520, 15
    %v568 = vpop.permute.xlu0 %567
    %v569 = vsel %vm178, %v562, %v566
    %v570 = vsel %vm178, %v564, %v568
    %v571 = vsel %vm178, %v566, %v562
    %v572 = vsel %vm178, %v568, %v564
    %v573 = vmul.f32 %v571, %v184
    %v574 = vmul.f32 %v569, %v185
    %v575 = vmul.f32 %v572, %v184
    %v576 = vmul.f32 %v570, %v185
    %v577 = vpack.c.bf16 %v574, %v573
    %v578 = vpack.c.bf16 %v576, %v575
    %579 = vst [vmem:[#allocation3 + $0x40] sm:$0xff] %v577
    %580 = vst [vmem:[#allocation3 + $0x50] sm:$0xff] %v578
    %581 = vrot.lane.b32.xlu0 %v517, 1
    %v582 = vpop.permute.xlu0 %581
    %583 = vrot.lane.b32.xlu0 %v519, 1
    %v584 = vpop.permute.xlu0 %583
    %585 = vrot.lane.b32.xlu0 %v518, 1
    %v586 = vpop.permute.xlu0 %585
    %587 = vrot.lane.b32.xlu0 %v520, 1
    %v588 = vpop.permute.xlu0 %587
    %v589 = vsel %vm204, %v582, %v586
    %v590 = vsel %vm204, %v584, %v588
    %v591 = vsel %vm204, %v586, %v582
    %v592 = vsel %vm204, %v588, %v584
    %v593 = vmul.f32 %v591, %v210
    %v594 = vmul.f32 %v589, %v211
    %v595 = vmul.f32 %v592, %v210
    %v596 = vmul.f32 %v590, %v211
    %v597 = vpack.c.bf16 %v594, %v593
    %v598 = vpack.c.bf16 %v596, %v595
    %599 = vst [vmem:[#allocation3 + $0x60] sm:$0xff] %v597
    %600 = vst [vmem:[#allocation3 + $0x70] sm:$0xff] %v598
    %v601 = vpack.c.bf16 %v518, %v517
    %v602 = vpack.c.bf16 %v520, %v519
    %603 = vst [vmem:[#allocation3 + $0x80] sm:$0xff] %v601
    %604 = vst [vmem:[#allocation3 + $0x90] sm:$0xff] %v602
    %605 = vrot.lane.b32.xlu0 %v517, 127
    %v606 = vpop.permute.xlu0 %605
    %607 = vrot.lane.b32.xlu0 %v519, 127
    %v608 = vpop.permute.xlu0 %607
    %609 = vrot.lane.b32.xlu0 %v518, 127
    %v610 = vpop.permute.xlu0 %609
    %611 = vrot.lane.b32.xlu0 %v520, 127
    %v612 = vpop.permute.xlu0 %611
    %v613 = vsel %vm234, %v606, %v610
    %v614 = vsel %vm234, %v608, %v612
    %v615 = vsel %vm234, %v610, %v606
    %v616 = vsel %vm234, %v612, %v608
    %v617 = vmul.f32 %v613, %v240
    %v618 = vmul.f32 %v615, %v241
    %v619 = vmul.f32 %v614, %v240
    %v620 = vmul.f32 %v616, %v241
    %v621 = vpack.c.bf16 %v618, %v617
    %v622 = vpack.c.bf16 %v620, %v619
    %623 = vst [vmem:[#allocation3 + $0xa0] sm:$0xff] %v621
    %624 = vst [vmem:[#allocation3 + $0xb0] sm:$0xff] %v622
    %625 = vrot.lane.b32.xlu0 %v517, 113
    %v626 = vpop.permute.xlu0 %625
    %627 = vrot.lane.b32.xlu0 %v519, 113
    %v628 = vpop.permute.xlu0 %627
    %629 = vrot.lane.b32.xlu0 %v518, 113
    %v630 = vpop.permute.xlu0 %629
    %631 = vrot.lane.b32.xlu0 %v520, 113
    %v632 = vpop.permute.xlu0 %631
    %v633 = vsel %vm260, %v626, %v630
    %v634 = vsel %vm260, %v628, %v632
    %v635 = vsel %vm260, %v630, %v626
    %v636 = vsel %vm260, %v632, %v628
    %v637 = vmul.f32 %v633, %v266
    %v638 = vmul.f32 %v635, %v267
    %v639 = vmul.f32 %v634, %v266
    %v640 = vmul.f32 %v636, %v267
    %v641 = vpack.c.bf16 %v638, %v637
    %v642 = vpack.c.bf16 %v640, %v639
    %643 = vst [vmem:[#allocation3 + $0xc0] sm:$0xff] %v641
    %644 = vst [vmem:[#allocation3 + $0xd0] sm:$0xff] %v642
    %645 = vrot.lane.b32.xlu0 %v517, 112
    %v646 = vpop.permute.xlu0 %645
    %647 = vrot.lane.b32.xlu0 %v519, 112
    %v648 = vpop.permute.xlu0 %647
    %649 = vrot.lane.b32.xlu0 %v518, 112
    %v650 = vpop.permute.xlu0 %649
    %651 = vrot.lane.b32.xlu0 %v520, 112
    %v652 = vpop.permute.xlu0 %651
    %v653 = vsel %vm286, %v646, %v650
    %v654 = vsel %vm286, %v648, %v652
    %v655 = vsel %vm286, %v650, %v646
    %v656 = vsel %vm286, %v652, %v648
    %v657 = vmul.f32 %v653, %v292
    %v658 = vmul.f32 %v655, %v293
    %v659 = vmul.f32 %v654, %v292
    %v660 = vmul.f32 %v656, %v293
    %v661 = vpack.c.bf16 %v658, %v657
    %v662 = vpack.c.bf16 %v660, %v659
    %663 = vst [vmem:[#allocation3 + $0xe0] sm:$0xff] %v661
    %664 = vst [vmem:[#allocation3 + $0xf0] sm:$0xff] %v662
    %665 = vrot.lane.b32.xlu0 %v517, 111
    %v666 = vpop.permute.xlu0 %665
    %667 = vrot.lane.b32.xlu0 %v519, 111
    %v668 = vpop.permute.xlu0 %667
    %669 = vrot.lane.b32.xlu0 %v518, 111
    %v670 = vpop.permute.xlu0 %669
    %671 = vrot.lane.b32.xlu0 %v520, 111
    %v672 = vpop.permute.xlu0 %671
    %v673 = vsel %vm312, %v666, %v670
    %v674 = vsel %vm312, %v668, %v672
    %v675 = vsel %vm312, %v670, %v666
    %v676 = vsel %vm312, %v672, %v668
    %v677 = vmul.f32 %v673, %v318
    %v678 = vmul.f32 %v675, %v319
    %v679 = vmul.f32 %v674, %v318
    %v680 = vmul.f32 %v676, %v319
    %v681 = vpack.c.bf16 %v678, %v677
    %v682 = vpack.c.bf16 %v680, %v679
    %683 = vst [vmem:[#allocation3 + $0x100] sm:$0xff] %v681
    %684 = vst [vmem:[#allocation3 + $0x110] sm:$0xff] %v682
    %v685 = vld [vmem:[#allocation3] sm:$0xff]
    %v686 = vld [vmem:[#allocation3 + $0x10] sm:$0xff]
    %v687 = vld [vmem:[#allocation3 + $0x20] sm:$0xff]
    %v688 = vld [vmem:[#allocation3 + $0x30] sm:$0xff]
    %v689 = vld [vmem:[#allocation3 + $0x40] sm:$0xff]
    %v690 = vld [vmem:[#allocation3 + $0x50] sm:$0xff]
    %v691 = vld [vmem:[#allocation3 + $0x60] sm:$0xff]
    %v692 = vld [vmem:[#allocation3 + $0x70] sm:$0xff]
    %v693 = vld [vmem:[#allocation3 + $0x80] sm:$0xff]
    %v694 = vld [vmem:[#allocation3 + $0x90] sm:$0xff]
    %v695 = vld [vmem:[#allocation3 + $0xa0] sm:$0xff]
    %v696 = vld [vmem:[#allocation3 + $0xb0] sm:$0xff]
    %v697 = vld [vmem:[#allocation3 + $0xc0] sm:$0xff]
    %v698 = vld [vmem:[#allocation3 + $0xd0] sm:$0xff]
    %v699 = vld [vmem:[#allocation3 + $0xe0] sm:$0xff]
    %v700 = vld [vmem:[#allocation3 + $0xf0] sm:$0xff]
    %v701 = vld [vmem:[#allocation3 + $0x100] sm:$0xff]
    %v702 = vld [vmem:[#allocation3 + $0x110] sm:$0xff]
    %v703 = vld [vmem:[#allocation3 + $0x120] sm:$0xff]
    %v704 = vld [vmem:[#allocation3 + $0x130] sm:$0xff]
    %v706 = vunpack.c.l.b16 %v82
    %v707 = vunpack.c.h.b16 %v82
    %v708 = vpack.c.b16 %v706, %v706
    %v709 = vpack.c.b16 %v707, %v707
    %v731 = vunpack.c.l.b16 %v685
    %v732 = vunpack.c.h.b16 %v685
    %v733 = vunpack.c.l.b16 %v686
    %v734 = vunpack.c.h.b16 %v686
    %v735 = vunpack.c.l.b16 %v687
    %v736 = vunpack.c.h.b16 %v687
    %v737 = vunpack.c.l.b16 %v688
    %v738 = vunpack.c.h.b16 %v688
    %v739 = vunpack.c.l.b16 %v689
    %v740 = vunpack.c.h.b16 %v689
    %v741 = vunpack.c.l.b16 %v690
    %v742 = vunpack.c.h.b16 %v690
    %v743 = vunpack.c.l.b16 %v691
    %v744 = vunpack.c.h.b16 %v691
    %v745 = vunpack.c.l.b16 %v692
    %v746 = vunpack.c.h.b16 %v692
    %v747 = vunpack.c.l.b16 %v693
    %v748 = vunpack.c.h.b16 %v693
    %v749 = vunpack.c.l.b16 %v694
    %v750 = vunpack.c.h.b16 %v694
    %v751 = vunpack.c.l.b16 %v695
    %v752 = vunpack.c.h.b16 %v695
    %v753 = vunpack.c.l.b16 %v696
    %v754 = vunpack.c.h.b16 %v696
    %v755 = vunpack.c.l.b16 %v697
    %v756 = vunpack.c.h.b16 %v697
    %v757 = vunpack.c.l.b16 %v698
    %v758 = vunpack.c.h.b16 %v698
    %v759 = vunpack.c.l.b16 %v699
    %v760 = vunpack.c.h.b16 %v699
    %v761 = vunpack.c.l.b16 %v700
    %v762 = vunpack.c.h.b16 %v700
    %v763 = vunpack.c.l.b16 %v701
    %v764 = vunpack.c.h.b16 %v701
    %v765 = vunpack.c.l.b16 %v702
    %v766 = vunpack.c.h.b16 %v702
    %v767 = vunpack.c.l.b16 %v703
    %v768 = vunpack.c.h.b16 %v703
    %v769 = vunpack.c.l.b16 %v704
    %v770 = vunpack.c.h.b16 %v704
    %v771 = vpack.c.b16 %v733, %v731
    %v772 = vpack.c.b16 %v734, %v732
    %v773 = vpack.c.b16 %v737, %v735
    %v774 = vpack.c.b16 %v738, %v736
    %v775 = vpack.c.b16 %v741, %v739
    %v776 = vpack.c.b16 %v742, %v740
    %v777 = vpack.c.b16 %v745, %v743
    %v778 = vpack.c.b16 %v746, %v744
    %v779 = vpack.c.b16 %v749, %v747
    %v780 = vpack.c.b16 %v750, %v748
    %v781 = vpack.c.b16 %v753, %v751
    %v782 = vpack.c.b16 %v754, %v752
    %v783 = vpack.c.b16 %v757, %v755
    %v784 = vpack.c.b16 %v758, %v756
    %v785 = vpack.c.b16 %v761, %v759
    %v786 = vpack.c.b16 %v762, %v760
    %v787 = vpack.c.b16 %v765, %v763
    %v788 = vpack.c.b16 %v766, %v764
    %v789 = vpack.c.b16 %v769, %v767
    %v790 = vpack.c.b16 %v770, %v768
    %vm811 = vcmask 261120
    %v813 = vsel %vm811, %v709, 0
    %815 = vmatpush.bf16.msra.mxu0 %v785
    %816 = vmatpush.bf16.msra.mxu0 %v783
    %817 = vmatpush.bf16.msra.mxu0 %v781
    %818 = vmatpush.bf16.msra.mxu0 %v779
    %819 = vmatpush.bf16.msra.mxu0 %v777
    %820 = vmatpush.bf16.msra.mxu0 %v775
    %821 = vmatpush.bf16.msra.mxu0 %v773
    %822 = vmatpush.bf16.msra.mxu0 %v771
    %823 = vmatmul.bf16.gmra.mxu0 %v708
    %v824 = vpop.f32.mrf.mxu0
    %v825 = vadd.f32 0.0, %v824
    %v826 = vpop.f32.mrf.mxu0
    %827 = vdwg.mxu0
    %828 = vmatpush.bf16.msra.mxu0 0
    %829 = vmatpush.bf16.msra.mxu0 0
    %830 = vmatpush.bf16.msra.mxu0 0
    %831 = vmatpush.bf16.msra.mxu0 0
    %832 = vmatpush.bf16.msra.mxu0 0
    %833 = vmatpush.bf16.msra.mxu0 0
    %834 = vmatpush.bf16.msra.mxu0 %v789
    %835 = vmatpush.bf16.msra.mxu0 %v787
    %836 = vmatmul.bf16.gmra.mxu0 %v813
    %v837 = vpop.f32.mrf.mxu0
    %v838 = vadd.f32 %v825, %v837
    %v839 = vpop.f32.mrf.mxu0
    %840 = vdwg.mxu0
    %841 = vmatpush.bf16.msra.mxu0 %v786
    %842 = vmatpush.bf16.msra.mxu0 %v784
    %843 = vmatpush.bf16.msra.mxu0 %v782
    %844 = vmatpush.bf16.msra.mxu0 %v780
    %845 = vmatpush.bf16.msra.mxu0 %v778
    %846 = vmatpush.bf16.msra.mxu0 %v776
    %847 = vmatpush.bf16.msra.mxu0 %v774
    %848 = vmatpush.bf16.msra.mxu0 %v772
    %849 = vmatmul.bf16.gmra.mxu0 %v708
    %v850 = vpop.f32.mrf.mxu0
    %v851 = vadd.f32 0.0, %v850
    %v852 = vpop.f32.mrf.mxu0
    %853 = vdwg.mxu0
    %854 = vmatpush.bf16.msra.mxu0 0
    %855 = vmatpush.bf16.msra.mxu0 0
    %856 = vmatpush.bf16.msra.mxu0 0
    %857 = vmatpush.bf16.msra.mxu0 0
    %858 = vmatpush.bf16.msra.mxu0 0
    %859 = vmatpush.bf16.msra.mxu0 0
    %860 = vmatpush.bf16.msra.mxu0 %v790
    %861 = vmatpush.bf16.msra.mxu0 %v788
    %862 = vmatmul.bf16.gmra.mxu0 %v813
    %v863 = vpop.f32.mrf.mxu0
    %v864 = vadd.f32 %v851, %v863
    %v865 = vpop.f32.mrf.mxu0
    %866 = vdwg.mxu0
    %867 = vst [vmem:[#allocation12] sm:$0xff] %v838
    %868 = vst [vmem:[#allocation12 + $0x8] sm:$0xff] %v864
    %s869 = scalar_lea.vmem [#allocation4], 16
    %v870 = vld [vmem:[%s869] sm:$0xff]
    %v871 = vld [vmem:[%s869 + $0x8] sm:$0xff]
    %v872 = vunpack.c.l.bf16 %v870
    %v873 = vunpack.c.h.bf16 %v870
    %v874 = vunpack.c.l.bf16 %v871
    %v875 = vunpack.c.h.bf16 %v871
    %vm876 = vcmp.ge.f32.partialorder %v872, 0.0
    %vm877 = vcmp.ge.f32.partialorder %v873, 0.0
    %vm878 = vcmp.ge.f32.partialorder %v874, 0.0
    %vm879 = vcmp.ge.f32.partialorder %v875, 0.0
    %v880 = vmul.f32 %v872, 0.2
    %v881 = vmul.f32 %v873, 0.2
    %v882 = vmul.f32 %v874, 0.2
    %v883 = vmul.f32 %v875, 0.2
    %v884 = vsel %vm876, %v872, %v880
    %v885 = vsel %vm877, %v873, %v881
    %v886 = vsel %vm878, %v874, %v882
    %v887 = vsel %vm879, %v875, %v883
    %888 = vrot.lane.b32.xlu0 %v884, 17
    %v889 = vpop.permute.xlu0 %888
    %890 = vrot.lane.b32.xlu0 %v886, 17
    %v891 = vpop.permute.xlu0 %890
    %892 = vrot.lane.b32.xlu0 %v885, 17
    %v893 = vpop.permute.xlu0 %892
    %894 = vrot.lane.b32.xlu0 %v887, 17
    %v895 = vpop.permute.xlu0 %894
    %v896 = vsel %vm126, %v889, %v893
    %v897 = vsel %vm126, %v891, %v895
    %v898 = vsel %vm126, %v893, %v889
    %v899 = vsel %vm126, %v895, %v891
    %v900 = vmul.f32 %v898, %v132
    %v901 = vmul.f32 %v896, %v133
    %v902 = vmul.f32 %v899, %v132
    %v903 = vmul.f32 %v897, %v133
    %v904 = vpack.c.bf16 %v901, %v900
    %v905 = vpack.c.bf16 %v903, %v902
    %906 = vst [vmem:[#allocation2 + $0x8] sm:$0xff] %v904
    %907 = vst [vmem:[#allocation2 + $0x18] sm:$0xff] %v905
    %908 = vrot.lane.b32.xlu0 %v884, 16
    %v909 = vpop.permute.xlu0 %908
    %910 = vrot.lane.b32.xlu0 %v886, 16
    %v911 = vpop.permute.xlu0 %910
    %912 = vrot.lane.b32.xlu0 %v885, 16
    %v913 = vpop.permute.xlu0 %912
    %914 = vrot.lane.b32.xlu0 %v887, 16
    %v915 = vpop.permute.xlu0 %914
    %v916 = vsel %vm152, %v909, %v913
    %v917 = vsel %vm152, %v911, %v915
    %v918 = vsel %vm152, %v913, %v909
    %v919 = vsel %vm152, %v915, %v911
    %v920 = vmul.f32 %v918, %v158
    %v921 = vmul.f32 %v916, %v159
    %v922 = vmul.f32 %v919, %v158
    %v923 = vmul.f32 %v917, %v159
    %v924 = vpack.c.bf16 %v921, %v920
    %v925 = vpack.c.bf16 %v923, %v922
    %926 = vst [vmem:[#allocation2 + $0x28] sm:$0xff] %v924
    %927 = vst [vmem:[#allocation2 + $0x38] sm:$0xff] %v925
    %928 = vrot.lane.b32.xlu0 %v884, 15
    %v929 = vpop.permute.xlu0 %928
    %930 = vrot.lane.b32.xlu0 %v886, 15
    %v931 = vpop.permute.xlu0 %930
    %932 = vrot.lane.b32.xlu0 %v885, 15
    %v933 = vpop.permute.xlu0 %932
    %934 = vrot.lane.b32.xlu0 %v887, 15
    %v935 = vpop.permute.xlu0 %934
    %v936 = vsel %vm178, %v929, %v933
    %v937 = vsel %vm178, %v931, %v935
    %v938 = vsel %vm178, %v933, %v929
    %v939 = vsel %vm178, %v935, %v931
    %v940 = vmul.f32 %v938, %v184
    %v941 = vmul.f32 %v936, %v185
    %v942 = vmul.f32 %v939, %v184
    %v943 = vmul.f32 %v937, %v185
    %v944 = vpack.c.bf16 %v941, %v940
    %v945 = vpack.c.bf16 %v943, %v942
    %946 = vst [vmem:[#allocation2 + $0x48] sm:$0xff] %v944
    %947 = vst [vmem:[#allocation2 + $0x58] sm:$0xff] %v945
    %948 = vrot.lane.b32.xlu0 %v884, 1
    %v949 = vpop.permute.xlu0 %948
    %950 = vrot.lane.b32.xlu0 %v886, 1
    %v951 = vpop.permute.xlu0 %950
    %952 = vrot.lane.b32.xlu0 %v885, 1
    %v953 = vpop.permute.xlu0 %952
    %954 = vrot.lane.b32.xlu0 %v887, 1
    %v955 = vpop.permute.xlu0 %954
    %v956 = vsel %vm204, %v949, %v953
    %v957 = vsel %vm204, %v951, %v955
    %v958 = vsel %vm204, %v953, %v949
    %v959 = vsel %vm204, %v955, %v951
    %v960 = vmul.f32 %v958, %v210
    %v961 = vmul.f32 %v956, %v211
    %v962 = vmul.f32 %v959, %v210
    %v963 = vmul.f32 %v957, %v211
    %v964 = vpack.c.bf16 %v961, %v960
    %v965 = vpack.c.bf16 %v963, %v962
    %966 = vst [vmem:[#allocation2 + $0x68] sm:$0xff] %v964
    %967 = vst [vmem:[#allocation2 + $0x78] sm:$0xff] %v965
    %v968 = vpack.c.bf16 %v885, %v884
    %v969 = vpack.c.bf16 %v887, %v886
    %970 = vst [vmem:[#allocation2 + $0x88] sm:$0xff] %v968
    %971 = vst [vmem:[#allocation2 + $0x98] sm:$0xff] %v969
    %972 = vrot.lane.b32.xlu0 %v884, 127
    %v973 = vpop.permute.xlu0 %972
    %974 = vrot.lane.b32.xlu0 %v886, 127
    %v975 = vpop.permute.xlu0 %974
    %976 = vrot.lane.b32.xlu0 %v885, 127
    %v977 = vpop.permute.xlu0 %976
    %978 = vrot.lane.b32.xlu0 %v887, 127
    %v979 = vpop.permute.xlu0 %978
    %v980 = vsel %vm234, %v973, %v977
    %v981 = vsel %vm234, %v975, %v979
    %v982 = vsel %vm234, %v977, %v973
    %v983 = vsel %vm234, %v979, %v975
    %v984 = vmul.f32 %v980, %v240
    %v985 = vmul.f32 %v982, %v241
    %v986 = vmul.f32 %v981, %v240
    %v987 = vmul.f32 %v983, %v241
    %v988 = vpack.c.bf16 %v985, %v984
    %v989 = vpack.c.bf16 %v987, %v986
    %990 = vst [vmem:[#allocation2 + $0xa8] sm:$0xff] %v988
    %991 = vst [vmem:[#allocation2 + $0xb8] sm:$0xff] %v989
    %992 = vrot.lane.b32.xlu0 %v884, 113
    %v993 = vpop.permute.xlu0 %992
    %994 = vrot.lane.b32.xlu0 %v886, 113
    %v995 = vpop.permute.xlu0 %994
    %996 = vrot.lane.b32.xlu0 %v885, 113
    %v997 = vpop.permute.xlu0 %996
    %998 = vrot.lane.b32.xlu0 %v887, 113
    %v999 = vpop.permute.xlu0 %998
    %v1000 = vsel %vm260, %v993, %v997
    %v1001 = vsel %vm260, %v995, %v999
    %v1002 = vsel %vm260, %v997, %v993
    %v1003 = vsel %vm260, %v999, %v995
    %v1004 = vmul.f32 %v1000, %v266
    %v1005 = vmul.f32 %v1002, %v267
    %v1006 = vmul.f32 %v1001, %v266
    %v1007 = vmul.f32 %v1003, %v267
    %v1008 = vpack.c.bf16 %v1005, %v1004
    %v1009 = vpack.c.bf16 %v1007, %v1006
    %1010 = vst [vmem:[#allocation2 + $0xc8] sm:$0xff] %v1008
    %1011 = vst [vmem:[#allocation2 + $0xd8] sm:$0xff] %v1009
    %1012 = vrot.lane.b32.xlu0 %v884, 112
    %v1013 = vpop.permute.xlu0 %1012
    %1014 = vrot.lane.b32.xlu0 %v886, 112
    %v1015 = vpop.permute.xlu0 %1014
    %1016 = vrot.lane.b32.xlu0 %v885, 112
    %v1017 = vpop.permute.xlu0 %1016
    %1018 = vrot.lane.b32.xlu0 %v887, 112
    %v1019 = vpop.permute.xlu0 %1018
    %v1020 = vsel %vm286, %v1013, %v1017
    %v1021 = vsel %vm286, %v1015, %v1019
    %v1022 = vsel %vm286, %v1017, %v1013
    %v1023 = vsel %vm286, %v1019, %v1015
    %v1024 = vmul.f32 %v1020, %v292
    %v1025 = vmul.f32 %v1022, %v293
    %v1026 = vmul.f32 %v1021, %v292
    %v1027 = vmul.f32 %v1023, %v293
    %v1028 = vpack.c.bf16 %v1025, %v1024
    %v1029 = vpack.c.bf16 %v1027, %v1026
    %1030 = vst [vmem:[#allocation2 + $0xe8] sm:$0xff] %v1028
    %1031 = vst [vmem:[#allocation2 + $0xf8] sm:$0xff] %v1029
    %1032 = vrot.lane.b32.xlu0 %v884, 111
    %v1033 = vpop.permute.xlu0 %1032
    %1034 = vrot.lane.b32.xlu0 %v886, 111
    %v1035 = vpop.permute.xlu0 %1034
    %1036 = vrot.lane.b32.xlu0 %v885, 111
    %v1037 = vpop.permute.xlu0 %1036
    %1038 = vrot.lane.b32.xlu0 %v887, 111
    %v1039 = vpop.permute.xlu0 %1038
    %v1040 = vsel %vm312, %v1033, %v1037
    %v1041 = vsel %vm312, %v1035, %v1039
    %v1042 = vsel %vm312, %v1037, %v1033
    %v1043 = vsel %vm312, %v1039, %v1035
    %v1044 = vmul.f32 %v1040, %v318
    %v1045 = vmul.f32 %v1042, %v319
    %v1046 = vmul.f32 %v1041, %v318
    %v1047 = vmul.f32 %v1043, %v319
    %v1048 = vpack.c.bf16 %v1045, %v1044
    %v1049 = vpack.c.bf16 %v1047, %v1046
    %1050 = vst [vmem:[#allocation2 + $0x108] sm:$0xff] %v1048
    %1051 = vst [vmem:[#allocation2 + $0x118] sm:$0xff] %v1049
    %1052 = vst [vmem:[#allocation3 + $0x128] sm:$0xff] %v870
    %1053 = vst [vmem:[#allocation3 + $0x138] sm:$0xff] %v871
    %v1054 = vld [vmem:[#allocation2 + $0x8] sm:$0xff]
    %v1055 = vld [vmem:[#allocation2 + $0x18] sm:$0xff]
    %v1056 = vld [vmem:[#allocation2 + $0x28] sm:$0xff]
    %v1057 = vld [vmem:[#allocation2 + $0x38] sm:$0xff]
    %v1058 = vld [vmem:[#allocation2 + $0x48] sm:$0xff]
    %v1059 = vld [vmem:[#allocation2 + $0x58] sm:$0xff]
    %v1060 = vld [vmem:[#allocation2 + $0x68] sm:$0xff]
    %v1061 = vld [vmem:[#allocation2 + $0x78] sm:$0xff]
    %v1062 = vld [vmem:[#allocation2 + $0x88] sm:$0xff]
    %v1063 = vld [vmem:[#allocation2 + $0x98] sm:$0xff]
    %v1064 = vld [vmem:[#allocation2 + $0xa8] sm:$0xff]
    %v1065 = vld [vmem:[#allocation2 + $0xb8] sm:$0xff]
    %v1066 = vld [vmem:[#allocation2 + $0xc8] sm:$0xff]
    %v1067 = vld [vmem:[#allocation2 + $0xd8] sm:$0xff]
    %v1068 = vld [vmem:[#allocation2 + $0xe8] sm:$0xff]
    %v1069 = vld [vmem:[#allocation2 + $0xf8] sm:$0xff]
    %v1070 = vld [vmem:[#allocation2 + $0x108] sm:$0xff]
    %v1071 = vld [vmem:[#allocation2 + $0x118] sm:$0xff]
    %v1090 = vunpack.c.l.b16 %v1054
    %v1091 = vunpack.c.h.b16 %v1054
    %v1092 = vunpack.c.l.b16 %v1055
    %v1093 = vunpack.c.h.b16 %v1055
    %v1094 = vunpack.c.l.b16 %v1056
    %v1095 = vunpack.c.h.b16 %v1056
    %v1096 = vunpack.c.l.b16 %v1057
    %v1097 = vunpack.c.h.b16 %v1057
    %v1098 = vunpack.c.l.b16 %v1058
    %v1099 = vunpack.c.h.b16 %v1058
    %v1100 = vunpack.c.l.b16 %v1059
    %v1101 = vunpack.c.h.b16 %v1059
    %v1102 = vunpack.c.l.b16 %v1060
    %v1103 = vunpack.c.h.b16 %v1060
    %v1104 = vunpack.c.l.b16 %v1061
    %v1105 = vunpack.c.h.b16 %v1061
    %v1106 = vunpack.c.l.b16 %v1062
    %v1107 = vunpack.c.h.b16 %v1062
    %v1108 = vunpack.c.l.b16 %v1063
    %v1109 = vunpack.c.h.b16 %v1063
    %v1110 = vunpack.c.l.b16 %v1064
    %v1111 = vunpack.c.h.b16 %v1064
    %v1112 = vunpack.c.l.b16 %v1065
    %v1113 = vunpack.c.h.b16 %v1065
    %v1114 = vunpack.c.l.b16 %v1066
    %v1115 = vunpack.c.h.b16 %v1066
    %v1116 = vunpack.c.l.b16 %v1067
    %v1117 = vunpack.c.h.b16 %v1067
    %v1118 = vunpack.c.l.b16 %v1068
    %v1119 = vunpack.c.h.b16 %v1068
    %v1120 = vunpack.c.l.b16 %v1069
    %v1121 = vunpack.c.h.b16 %v1069
    %v1122 = vunpack.c.l.b16 %v1070
    %v1123 = vunpack.c.h.b16 %v1070
    %v1124 = vunpack.c.l.b16 %v1071
    %v1125 = vunpack.c.h.b16 %v1071
    %v1126 = vpack.c.b16 %v1092, %v1090
    %v1127 = vpack.c.b16 %v1093, %v1091
    %v1128 = vpack.c.b16 %v1096, %v1094
    %v1129 = vpack.c.b16 %v1097, %v1095
    %v1130 = vpack.c.b16 %v1100, %v1098
    %v1131 = vpack.c.b16 %v1101, %v1099
    %v1132 = vpack.c.b16 %v1104, %v1102
    %v1133 = vpack.c.b16 %v1105, %v1103
    %v1134 = vpack.c.b16 %v1108, %v1106
    %v1135 = vpack.c.b16 %v1109, %v1107
    %v1136 = vpack.c.b16 %v1112, %v1110
    %v1137 = vpack.c.b16 %v1113, %v1111
    %v1138 = vpack.c.b16 %v1116, %v1114
    %v1139 = vpack.c.b16 %v1117, %v1115
    %v1140 = vpack.c.b16 %v1120, %v1118
    %v1141 = vpack.c.b16 %v1121, %v1119
    %v1142 = vpack.c.b16 %v1124, %v1122
    %v1143 = vpack.c.b16 %v1125, %v1123
    %1162 = vmatpush.bf16.msra.mxu0 %v1140
    %1163 = vmatpush.bf16.msra.mxu0 %v1138
    %1164 = vmatpush.bf16.msra.mxu0 %v1136
    %1165 = vmatpush.bf16.msra.mxu0 %v1134
    %1166 = vmatpush.bf16.msra.mxu0 %v1132
    %1167 = vmatpush.bf16.msra.mxu0 %v1130
    %1168 = vmatpush.bf16.msra.mxu0 %v1128
    %1169 = vmatpush.bf16.msra.mxu0 %v1126
    %1170 = vmatmul.bf16.gmra.mxu0 %v356
    %v1171 = vpop.f32.mrf.mxu0
    %v1172 = vadd.f32 0.0, %v1171
    %v1173 = vpop.f32.mrf.mxu0
    %v1174 = vadd.f32 0.0, %v1173
    %1175 = vdwg.mxu0
    %1176 = vmatpush.bf16.msra.mxu0 0
    %1177 = vmatpush.bf16.msra.mxu0 0
    %1178 = vmatpush.bf16.msra.mxu0 0
    %1179 = vmatpush.bf16.msra.mxu0 0
    %1180 = vmatpush.bf16.msra.mxu0 0
    %1181 = vmatpush.bf16.msra.mxu0 0
    %1182 = vmatpush.bf16.msra.mxu0 0
    %1183 = vmatpush.bf16.msra.mxu0 %v1142
    %1184 = vmatmul.bf16.gmra.mxu0 %v451
    %v1185 = vpop.f32.mrf.mxu0
    %v1186 = vadd.f32 %v1172, %v1185
    %v1187 = vpop.f32.mrf.mxu0
    %v1188 = vadd.f32 %v1174, %v1187
    %1189 = vdwg.mxu0
    %1190 = vmatpush.bf16.msra.mxu0 %v1141
    %1191 = vmatpush.bf16.msra.mxu0 %v1139
    %1192 = vmatpush.bf16.msra.mxu0 %v1137
    %1193 = vmatpush.bf16.msra.mxu0 %v1135
    %1194 = vmatpush.bf16.msra.mxu0 %v1133
    %1195 = vmatpush.bf16.msra.mxu0 %v1131
    %1196 = vmatpush.bf16.msra.mxu0 %v1129
    %1197 = vmatpush.bf16.msra.mxu0 %v1127
    %1198 = vmatmul.bf16.gmra.mxu0 %v356
    %v1199 = vpop.f32.mrf.mxu0
    %v1200 = vadd.f32 0.0, %v1199
    %v1201 = vpop.f32.mrf.mxu0
    %v1202 = vadd.f32 0.0, %v1201
    %1203 = vdwg.mxu0
    %1204 = vmatpush.bf16.msra.mxu0 0
    %1205 = vmatpush.bf16.msra.mxu0 0
    %1206 = vmatpush.bf16.msra.mxu0 0
    %1207 = vmatpush.bf16.msra.mxu0 0
    %1208 = vmatpush.bf16.msra.mxu0 0
    %1209 = vmatpush.bf16.msra.mxu0 0
    %1210 = vmatpush.bf16.msra.mxu0 0
    %1211 = vmatpush.bf16.msra.mxu0 %v1143
    %1212 = vmatmul.bf16.gmra.mxu0 %v451
    %v1213 = vpop.f32.mrf.mxu0
    %v1214 = vadd.f32 %v1200, %v1213
    %v1215 = vpop.f32.mrf.mxu0
    %v1216 = vadd.f32 %v1202, %v1215
    %1217 = vdwg.mxu0
    %vm1218 = vcmp.ge.f32.partialorder %v1186, 0.0
    %vm1219 = vcmp.ge.f32.partialorder %v1214, 0.0
    %vm1220 = vcmp.ge.f32.partialorder %v1188, 0.0
    %vm1221 = vcmp.ge.f32.partialorder %v1216, 0.0
    %v1222 = vmul.f32 %v1186, 0.2
    %v1223 = vmul.f32 %v1214, 0.2
    %v1224 = vmul.f32 %v1188, 0.2
    %v1225 = vmul.f32 %v1216, 0.2
    %v1226 = vsel %vm1218, %v1186, %v1222
    %v1227 = vsel %vm1219, %v1214, %v1223
    %v1228 = vsel %vm1220, %v1188, %v1224
    %v1229 = vsel %vm1221, %v1216, %v1225
    %1230 = vrot.lane.b32.xlu0 %v1226, 17
    %v1231 = vpop.permute.xlu0 %1230
    %1232 = vrot.lane.b32.xlu0 %v1228, 17
    %v1233 = vpop.permute.xlu0 %1232
    %1234 = vrot.lane.b32.xlu0 %v1227, 17
    %v1235 = vpop.permute.xlu0 %1234
    %1236 = vrot.lane.b32.xlu0 %v1229, 17
    %v1237 = vpop.permute.xlu0 %1236
    %v1238 = vsel %vm126, %v1231, %v1235
    %v1239 = vsel %vm126, %v1233, %v1237
    %v1240 = vsel %vm126, %v1235, %v1231
    %v1241 = vsel %vm126, %v1237, %v1233
    %v1242 = vmul.f32 %v1240, %v132
    %v1243 = vmul.f32 %v1238, %v133
    %v1244 = vmul.f32 %v1241, %v132
    %v1245 = vmul.f32 %v1239, %v133
    %v1246 = vpack.c.bf16 %v1243, %v1242
    %v1247 = vpack.c.bf16 %v1245, %v1244
    %1248 = vst [vmem:[#allocation3 + $0x8] sm:$0xff] %v1246
    %1249 = vst [vmem:[#allocation3 + $0x18] sm:$0xff] %v1247
    %1250 = vrot.lane.b32.xlu0 %v1226, 16
    %v1251 = vpop.permute.xlu0 %1250
    %1252 = vrot.lane.b32.xlu0 %v1228, 16
    %v1253 = vpop.permute.xlu0 %1252
    %1254 = vrot.lane.b32.xlu0 %v1227, 16
    %v1255 = vpop.permute.xlu0 %1254
    %1256 = vrot.lane.b32.xlu0 %v1229, 16
    %v1257 = vpop.permute.xlu0 %1256
    %v1258 = vsel %vm152, %v1251, %v1255
    %v1259 = vsel %vm152, %v1253, %v1257
    %v1260 = vsel %vm152, %v1255, %v1251
    %v1261 = vsel %vm152, %v1257, %v1253
    %v1262 = vmul.f32 %v1260, %v158
    %v1263 = vmul.f32 %v1258, %v159
    %v1264 = vmul.f32 %v1261, %v158
    %v1265 = vmul.f32 %v1259, %v159
    %v1266 = vpack.c.bf16 %v1263, %v1262
    %v1267 = vpack.c.bf16 %v1265, %v1264
    %1268 = vst [vmem:[#allocation3 + $0x28] sm:$0xff] %v1266
    %1269 = vst [vmem:[#allocation3 + $0x38] sm:$0xff] %v1267
    %1270 = vrot.lane.b32.xlu0 %v1226, 15
    %v1271 = vpop.permute.xlu0 %1270
    %1272 = vrot.lane.b32.xlu0 %v1228, 15
    %v1273 = vpop.permute.xlu0 %1272
    %1274 = vrot.lane.b32.xlu0 %v1227, 15
    %v1275 = vpop.permute.xlu0 %1274
    %1276 = vrot.lane.b32.xlu0 %v1229, 15
    %v1277 = vpop.permute.xlu0 %1276
    %v1278 = vsel %vm178, %v1271, %v1275
    %v1279 = vsel %vm178, %v1273, %v1277
    %v1280 = vsel %vm178, %v1275, %v1271
    %v1281 = vsel %vm178, %v1277, %v1273
    %v1282 = vmul.f32 %v1280, %v184
    %v1283 = vmul.f32 %v1278, %v185
    %v1284 = vmul.f32 %v1281, %v184
    %v1285 = vmul.f32 %v1279, %v185
    %v1286 = vpack.c.bf16 %v1283, %v1282
    %v1287 = vpack.c.bf16 %v1285, %v1284
    %1288 = vst [vmem:[#allocation3 + $0x48] sm:$0xff] %v1286
    %1289 = vst [vmem:[#allocation3 + $0x58] sm:$0xff] %v1287
    %1290 = vrot.lane.b32.xlu0 %v1226, 1
    %v1291 = vpop.permute.xlu0 %1290
    %1292 = vrot.lane.b32.xlu0 %v1228, 1
    %v1293 = vpop.permute.xlu0 %1292
    %1294 = vrot.lane.b32.xlu0 %v1227, 1
    %v1295 = vpop.permute.xlu0 %1294
    %1296 = vrot.lane.b32.xlu0 %v1229, 1
    %v1297 = vpop.permute.xlu0 %1296
    %v1298 = vsel %vm204, %v1291, %v1295
    %v1299 = vsel %vm204, %v1293, %v1297
    %v1300 = vsel %vm204, %v1295, %v1291
    %v1301 = vsel %vm204, %v1297, %v1293
    %v1302 = vmul.f32 %v1300, %v210
    %v1303 = vmul.f32 %v1298, %v211
    %v1304 = vmul.f32 %v1301, %v210
    %v1305 = vmul.f32 %v1299, %v211
    %v1306 = vpack.c.bf16 %v1303, %v1302
    %v1307 = vpack.c.bf16 %v1305, %v1304
    %1308 = vst [vmem:[#allocation3 + $0x68] sm:$0xff] %v1306
    %1309 = vst [vmem:[#allocation3 + $0x78] sm:$0xff] %v1307
    %v1310 = vpack.c.bf16 %v1227, %v1226
    %v1311 = vpack.c.bf16 %v1229, %v1228
    %1312 = vst [vmem:[#allocation3 + $0x88] sm:$0xff] %v1310
    %1313 = vst [vmem:[#allocation3 + $0x98] sm:$0xff] %v1311
    %1314 = vrot.lane.b32.xlu0 %v1226, 127
    %v1315 = vpop.permute.xlu0 %1314
    %1316 = vrot.lane.b32.xlu0 %v1228, 127
    %v1317 = vpop.permute.xlu0 %1316
    %1318 = vrot.lane.b32.xlu0 %v1227, 127
    %v1319 = vpop.permute.xlu0 %1318
    %1320 = vrot.lane.b32.xlu0 %v1229, 127
    %v1321 = vpop.permute.xlu0 %1320
    %v1322 = vsel %vm234, %v1315, %v1319
    %v1323 = vsel %vm234, %v1317, %v1321
    %v1324 = vsel %vm234, %v1319, %v1315
    %v1325 = vsel %vm234, %v1321, %v1317
    %v1326 = vmul.f32 %v1322, %v240
    %v1327 = vmul.f32 %v1324, %v241
    %v1328 = vmul.f32 %v1323, %v240
    %v1329 = vmul.f32 %v1325, %v241
    %v1330 = vpack.c.bf16 %v1327, %v1326
    %v1331 = vpack.c.bf16 %v1329, %v1328
    %1332 = vst [vmem:[#allocation3 + $0xa8] sm:$0xff] %v1330
    %1333 = vst [vmem:[#allocation3 + $0xb8] sm:$0xff] %v1331
    %1334 = vrot.lane.b32.xlu0 %v1226, 113
    %v1335 = vpop.permute.xlu0 %1334
    %1336 = vrot.lane.b32.xlu0 %v1228, 113
    %v1337 = vpop.permute.xlu0 %1336
    %1338 = vrot.lane.b32.xlu0 %v1227, 113
    %v1339 = vpop.permute.xlu0 %1338
    %1340 = vrot.lane.b32.xlu0 %v1229, 113
    %v1341 = vpop.permute.xlu0 %1340
    %v1342 = vsel %vm260, %v1335, %v1339
    %v1343 = vsel %vm260, %v1337, %v1341
    %v1344 = vsel %vm260, %v1339, %v1335
    %v1345 = vsel %vm260, %v1341, %v1337
    %v1346 = vmul.f32 %v1342, %v266
    %v1347 = vmul.f32 %v1344, %v267
    %v1348 = vmul.f32 %v1343, %v266
    %v1349 = vmul.f32 %v1345, %v267
    %v1350 = vpack.c.bf16 %v1347, %v1346
    %v1351 = vpack.c.bf16 %v1349, %v1348
    %1352 = vst [vmem:[#allocation3 + $0xc8] sm:$0xff] %v1350
    %1353 = vst [vmem:[#allocation3 + $0xd8] sm:$0xff] %v1351
    %1354 = vrot.lane.b32.xlu0 %v1226, 112
    %v1355 = vpop.permute.xlu0 %1354
    %1356 = vrot.lane.b32.xlu0 %v1228, 112
    %v1357 = vpop.permute.xlu0 %1356
    %1358 = vrot.lane.b32.xlu0 %v1227, 112
    %v1359 = vpop.permute.xlu0 %1358
    %1360 = vrot.lane.b32.xlu0 %v1229, 112
    %v1361 = vpop.permute.xlu0 %1360
    %v1362 = vsel %vm286, %v1355, %v1359
    %v1363 = vsel %vm286, %v1357, %v1361
    %v1364 = vsel %vm286, %v1359, %v1355
    %v1365 = vsel %vm286, %v1361, %v1357
    %v1366 = vmul.f32 %v1362, %v292
    %v1367 = vmul.f32 %v1364, %v293
    %v1368 = vmul.f32 %v1363, %v292
    %v1369 = vmul.f32 %v1365, %v293
    %v1370 = vpack.c.bf16 %v1367, %v1366
    %v1371 = vpack.c.bf16 %v1369, %v1368
    %1372 = vst [vmem:[#allocation3 + $0xe8] sm:$0xff] %v1370
    %1373 = vst [vmem:[#allocation3 + $0xf8] sm:$0xff] %v1371
    %1374 = vrot.lane.b32.xlu0 %v1226, 111
    %v1375 = vpop.permute.xlu0 %1374
    %1376 = vrot.lane.b32.xlu0 %v1228, 111
    %v1377 = vpop.permute.xlu0 %1376
    %1378 = vrot.lane.b32.xlu0 %v1227, 111
    %v1379 = vpop.permute.xlu0 %1378
    %1380 = vrot.lane.b32.xlu0 %v1229, 111
    %v1381 = vpop.permute.xlu0 %1380
    %v1382 = vsel %vm312, %v1375, %v1379
    %v1383 = vsel %vm312, %v1377, %v1381
    %v1384 = vsel %vm312, %v1379, %v1375
    %v1385 = vsel %vm312, %v1381, %v1377
    %v1386 = vmul.f32 %v1382, %v318
    %v1387 = vmul.f32 %v1384, %v319
    %v1388 = vmul.f32 %v1383, %v318
    %v1389 = vmul.f32 %v1385, %v319
    %v1390 = vpack.c.bf16 %v1387, %v1386
    %v1391 = vpack.c.bf16 %v1389, %v1388
    %1392 = vst [vmem:[#allocation3 + $0x108] sm:$0xff] %v1390
    %1393 = vst [vmem:[#allocation3 + $0x118] sm:$0xff] %v1391
    %v1394 = vld [vmem:[#allocation3 + $0x8] sm:$0xff]
    %v1395 = vld [vmem:[#allocation3 + $0x18] sm:$0xff]
    %v1396 = vld [vmem:[#allocation3 + $0x28] sm:$0xff]
    %v1397 = vld [vmem:[#allocation3 + $0x38] sm:$0xff]
    %v1398 = vld [vmem:[#allocation3 + $0x48] sm:$0xff]
    %v1399 = vld [vmem:[#allocation3 + $0x58] sm:$0xff]
    %v1400 = vld [vmem:[#allocation3 + $0x68] sm:$0xff]
    %v1401 = vld [vmem:[#allocation3 + $0x78] sm:$0xff]
    %v1402 = vld [vmem:[#allocation3 + $0x88] sm:$0xff]
    %v1403 = vld [vmem:[#allocation3 + $0x98] sm:$0xff]
    %v1404 = vld [vmem:[#allocation3 + $0xa8] sm:$0xff]
    %v1405 = vld [vmem:[#allocation3 + $0xb8] sm:$0xff]
    %v1406 = vld [vmem:[#allocation3 + $0xc8] sm:$0xff]
    %v1407 = vld [vmem:[#allocation3 + $0xd8] sm:$0xff]
    %v1408 = vld [vmem:[#allocation3 + $0xe8] sm:$0xff]
    %v1409 = vld [vmem:[#allocation3 + $0xf8] sm:$0xff]
    %v1410 = vld [vmem:[#allocation3 + $0x108] sm:$0xff]
    %v1411 = vld [vmem:[#allocation3 + $0x118] sm:$0xff]
    %v1412 = vld [vmem:[#allocation3 + $0x128] sm:$0xff]
    %v1413 = vld [vmem:[#allocation3 + $0x138] sm:$0xff]
    %v1434 = vunpack.c.l.b16 %v1394
    %v1435 = vunpack.c.h.b16 %v1394
    %v1436 = vunpack.c.l.b16 %v1395
    %v1437 = vunpack.c.h.b16 %v1395
    %v1438 = vunpack.c.l.b16 %v1396
    %v1439 = vunpack.c.h.b16 %v1396
    %v1440 = vunpack.c.l.b16 %v1397
    %v1441 = vunpack.c.h.b16 %v1397
    %v1442 = vunpack.c.l.b16 %v1398
    %v1443 = vunpack.c.h.b16 %v1398
    %v1444 = vunpack.c.l.b16 %v1399
    %v1445 = vunpack.c.h.b16 %v1399
    %v1446 = vunpack.c.l.b16 %v1400
    %v1447 = vunpack.c.h.b16 %v1400
    %v1448 = vunpack.c.l.b16 %v1401
    %v1449 = vunpack.c.h.b16 %v1401
    %v1450 = vunpack.c.l.b16 %v1402
    %v1451 = vunpack.c.h.b16 %v1402
    %v1452 = vunpack.c.l.b16 %v1403
    %v1453 = vunpack.c.h.b16 %v1403
    %v1454 = vunpack.c.l.b16 %v1404
    %v1455 = vunpack.c.h.b16 %v1404
    %v1456 = vunpack.c.l.b16 %v1405
    %v1457 = vunpack.c.h.b16 %v1405
    %v1458 = vunpack.c.l.b16 %v1406
    %v1459 = vunpack.c.h.b16 %v1406
    %v1460 = vunpack.c.l.b16 %v1407
    %v1461 = vunpack.c.h.b16 %v1407
    %v1462 = vunpack.c.l.b16 %v1408
    %v1463 = vunpack.c.h.b16 %v1408
    %v1464 = vunpack.c.l.b16 %v1409
    %v1465 = vunpack.c.h.b16 %v1409
    %v1466 = vunpack.c.l.b16 %v1410
    %v1467 = vunpack.c.h.b16 %v1410
    %v1468 = vunpack.c.l.b16 %v1411
    %v1469 = vunpack.c.h.b16 %v1411
    %v1470 = vunpack.c.l.b16 %v1412
    %v1471 = vunpack.c.h.b16 %v1412
    %v1472 = vunpack.c.l.b16 %v1413
    %v1473 = vunpack.c.h.b16 %v1413
    %v1474 = vpack.c.b16 %v1436, %v1434
    %v1475 = vpack.c.b16 %v1437, %v1435
    %v1476 = vpack.c.b16 %v1440, %v1438
    %v1477 = vpack.c.b16 %v1441, %v1439
    %v1478 = vpack.c.b16 %v1444, %v1442
    %v1479 = vpack.c.b16 %v1445, %v1443
    %v1480 = vpack.c.b16 %v1448, %v1446
    %v1481 = vpack.c.b16 %v1449, %v1447
    %v1482 = vpack.c.b16 %v1452, %v1450
    %v1483 = vpack.c.b16 %v1453, %v1451
    %v1484 = vpack.c.b16 %v1456, %v1454
    %v1485 = vpack.c.b16 %v1457, %v1455
    %v1486 = vpack.c.b16 %v1460, %v1458
    %v1487 = vpack.c.b16 %v1461, %v1459
    %v1488 = vpack.c.b16 %v1464, %v1462
    %v1489 = vpack.c.b16 %v1465, %v1463
    %v1490 = vpack.c.b16 %v1468, %v1466
    %v1491 = vpack.c.b16 %v1469, %v1467
    %v1492 = vpack.c.b16 %v1472, %v1470
    %v1493 = vpack.c.b16 %v1473, %v1471
    %1514 = vmatpush.bf16.msra.mxu0 %v1488
    %1515 = vmatpush.bf16.msra.mxu0 %v1486
    %1516 = vmatpush.bf16.msra.mxu0 %v1484
    %1517 = vmatpush.bf16.msra.mxu0 %v1482
    %1518 = vmatpush.bf16.msra.mxu0 %v1480
    %1519 = vmatpush.bf16.msra.mxu0 %v1478
    %1520 = vmatpush.bf16.msra.mxu0 %v1476
    %1521 = vmatpush.bf16.msra.mxu0 %v1474
    %1522 = vmatmul.bf16.gmra.mxu0 %v708
    %v1523 = vpop.f32.mrf.mxu0
    %v1524 = vadd.f32 0.0, %v1523
    %v1525 = vpop.f32.mrf.mxu0
    %1526 = vdwg.mxu0
    %1527 = vmatpush.bf16.msra.mxu0 0
    %1528 = vmatpush.bf16.msra.mxu0 0
    %1529 = vmatpush.bf16.msra.mxu0 0
    %1530 = vmatpush.bf16.msra.mxu0 0
    %1531 = vmatpush.bf16.msra.mxu0 0
    %1532 = vmatpush.bf16.msra.mxu0 0
    %1533 = vmatpush.bf16.msra.mxu0 %v1492
    %1534 = vmatpush.bf16.msra.mxu0 %v1490
    %1535 = vmatmul.bf16.gmra.mxu0 %v813
    %v1536 = vpop.f32.mrf.mxu0
    %v1537 = vadd.f32 %v1524, %v1536
    %v1538 = vpop.f32.mrf.mxu0
    %1539 = vdwg.mxu0
    %1540 = vmatpush.bf16.msra.mxu0 %v1489
    %1541 = vmatpush.bf16.msra.mxu0 %v1487
    %1542 = vmatpush.bf16.msra.mxu0 %v1485
    %1543 = vmatpush.bf16.msra.mxu0 %v1483
    %1544 = vmatpush.bf16.msra.mxu0 %v1481
    %1545 = vmatpush.bf16.msra.mxu0 %v1479
    %1546 = vmatpush.bf16.msra.mxu0 %v1477
    %1547 = vmatpush.bf16.msra.mxu0 %v1475
    %1548 = vmatmul.bf16.gmra.mxu0 %v708
    %v1549 = vpop.f32.mrf.mxu0
    %v1550 = vadd.f32 0.0, %v1549
    %v1551 = vpop.f32.mrf.mxu0
    %1552 = vdwg.mxu0
    %1553 = vmatpush.bf16.msra.mxu0 0
    %1554 = vmatpush.bf16.msra.mxu0 0
    %1555 = vmatpush.bf16.msra.mxu0 0
    %1556 = vmatpush.bf16.msra.mxu0 0
    %1557 = vmatpush.bf16.msra.mxu0 0
    %1558 = vmatpush.bf16.msra.mxu0 0
    %1559 = vmatpush.bf16.msra.mxu0 %v1493
    %1560 = vmatpush.bf16.msra.mxu0 %v1491
    %1561 = vmatmul.bf16.gmra.mxu0 %v813
    %v1562 = vpop.f32.mrf.mxu0
    %v1563 = vadd.f32 %v1550, %v1562
    %v1564 = vpop.f32.mrf.mxu0
    %1565 = vdwg.mxu0
    %s1566 = scalar_lea.vmem [#allocation12], 16
    %1567 = vst [vmem:[%s1566] sm:$0xff] %v1537
    %1568 = vst [vmem:[%s1566 + $0x8] sm:$0xff] %v1563
    // Predicated region
    $region34: #{tpu_custom_call.1} parent=1 // pred_check
      _
    $region35: #{tpu_custom_call.1} parent=1 // pred_check_branch
      %1570 = sbr.rel (0) target = $region37
    $region36: #{tpu_custom_call.1} parent=1 // pred_region
      %1572 = vsyncadd [#allocation6], 0
      %s1573 = sshll.u32 [#allocation12], 4
      %s1574 = int_to_ptr.vmem [resolvable:$true] %s1573
      %s1575 = sshll.u32 %s4, 4
      %s1576 = int_to_ptr.hbm [resolvable:$true] %s1575
      %1581 = dma.vmem_to_hbm [thread:$0]  %s1574, 512, %s1576, [#allocation6], 256, 256, 16
    $region37: #{tpu_custom_call.1} parent=1 // pred_fallthru
      _
    // Predicated region
    $region38: #{tpu_custom_call.1} parent=1 // pred_check
      _
    $region39: #{tpu_custom_call.1} parent=1 // pred_check_branch
      %1583 = sbr.rel (0) target = $region41
    $region40: #{tpu_custom_call.1} parent=1 // pred_region
      %1585 = dma.done [#allocation6], 512
    $region41: #{tpu_custom_call.1} parent=1 // pred_fallthru
      _
    %1586 = vsyncpa [#allocation5], 1
    %1587 = vsyncpa [#allocation8], 1
    %1588 = vsyncpa [#allocation11], 1
    %1589 = vsyncpa [#allocation6], 1

</llo_original>
